<compile_context>
chip_gen: v7x
topology: tpu7x:2x2x1
jax: 0.10.0
libtpu: 0.0.40
codegen_flags: <defaults>
</compile_context>

<pallas_src>
import functools

import jax
import jax.numpy as jnp
import numpy as np
from jax.experimental import pallas as pl
from jax.experimental.pallas import tpu as pltpu


# ------------------------------ tiling helpers ------------------------------

_VMEM_LIMIT = 48 * 1024 * 1024   # < 64 MiB (v7x per-TC), < 128 MiB (v5e/v6e)


def _round_up(x, m):
    return ((x + m - 1) // m) * m


def _pick_tile(dim, target, align):
    """Largest tile <= target that is a multiple of `align` and divides `dim`;
    falls back to the full dim (legal: block == full array dim).  Used only
    for channel-count dims which are well behaved."""
    if dim <= target:
        return dim
    t = (target // align) * align
    while t >= align:
        if dim % t == 0:
            return t
        t -= align
    return dim


def _tile_pad(dim, target, align):
    """Return (tile, padded_dim) with tile | padded_dim, tile multiple of
    `align`, tile bounded by `target`.  Used for the B*H*W row axes so an
    awkward factorization never produces a huge un-pipelined block (v7x)."""
    if dim <= target:
        p = _round_up(dim, align)
        return p, p
    t = (target // align) * align
    if dim % t == 0:
        return t, dim
    return t, _round_up(dim, t)


# ------------------------- tiled matmul (1x1 convs) --------------------------

def _matmul_kernel(x_ref, w_ref, b_ref, o_ref, acc_ref, *, relu):
    k = pl.program_id(2)

    @pl.when(k == 0)
    def _():
        acc_ref[...] = jnp.zeros_like(acc_ref)

    acc_ref[...] += jnp.dot(x_ref[...], w_ref[...],
                            preferred_element_type=jnp.float32)

    @pl.when(k == pl.num_programs(2) - 1)
    def _():
        r = acc_ref[...] + b_ref[...]
        if relu:
            r = jnp.maximum(r, 0.0)
        o_ref[...] = r.astype(o_ref.dtype)


def matmul_bias_act(x, w, bias, *, relu, out_dtype=jnp.float32):
    # x: (N, K), w: (K, Cout), bias: (Cout,)   BN already folded into w/bias.
    N, K = x.shape
    Cout = w.shape[1]
    # Larger tiles amortize per-step overhead / MXU weight loads (v6e/v7x);
    # 16-row alignment matches bf16 sublane packing (v5e).
    bn, Np = _tile_pad(N, 1024, 16)
    bc = _pick_tile(Cout, 512, 128)
    bk = _pick_tile(K, 512, 128)
    xb = x.astype(jnp.bfloat16)          # bf16 at the pallas_call boundary,
    if Np != N:
        xb = jnp.pad(xb, ((0, Np - N), (0, 0)))
    wb = w.astype(jnp.bfloat16)          # f32 accumulation inside.
    b2 = bias.reshape(1, Cout).astype(jnp.float32)
    kernel = functools.partial(_matmul_kernel, relu=relu)
    out = pl.pallas_call(
        kernel,
        out_shape=jax.ShapeDtypeStruct((Np, Cout), out_dtype),
        grid_spec=pltpu.PrefetchScalarGridSpec(
            num_scalar_prefetch=0,
            grid=(Np // bn, Cout // bc, K // bk),
            in_specs=[
                pl.BlockSpec((bn, bk), lambda i, j, k: (i, k)),
                pl.BlockSpec((bk, bc), lambda i, j, k: (k, j)),
                pl.BlockSpec((1, bc), lambda i, j, k: (0, j)),
            ],
            out_specs=pl.BlockSpec((bn, bc), lambda i, j, k: (i, j)),
            scratch_shapes=[pltpu.VMEM((bn, bc), jnp.float32)],
        ),
        compiler_params=pltpu.CompilerParams(
            dimension_semantics=("parallel", "parallel", "arbitrary"),
            vmem_limit_bytes=_VMEM_LIMIT),
    )(xb, wb, b2)
    return out[:N] if Np != N else out


def conv1x1(x_nhwc, w, bias, *, relu, stride=1, out_dtype=jnp.float32):
    if stride != 1:
        x_nhwc = x_nhwc[:, ::stride, ::stride, :]
    B, H, W, Cin = x_nhwc.shape
    Cout = w.shape[1]
    out = matmul_bias_act(x_nhwc.reshape(B * H * W, Cin), w, bias,
                          relu=relu, out_dtype=out_dtype)
    return out.reshape(B, H, W, Cout)


# ------------- fused depthwise SK branches + branch-sum + avg-pool -----------

def _dw_branches_kernel(x_ref, w_ref, b_ref, y_ref, s_ref, pad_ref, *,
                        dilations, H, W, max_pad):
    # x_ref  : (1, H, W, C)  unpadded activation of one image (bf16)
    # w_ref  : (M, 9, C)     depthwise tap weights (BN folded, f32)
    # b_ref  : (M, C)        folded biases
    # y_ref  : (M, 1, H, W, C) per-branch ReLU outputs (bf16)
    # s_ref  : (1, 1, C)     mean_HW( sum_branches y ) (SK pooling, fused)
    # pad_ref: (Hp, Wp, C)   f32 VMEM scratch holding the zero-padded image.
    #
    # Zero halo built in VMEM (no XLA-side jnp.pad / HBM round trip).  Scratch
    # is re-zeroed every step since it is per-core and the grid is 'parallel'.
    pad_ref[...] = jnp.zeros_like(pad_ref)
    pad_ref[pl.ds(max_pad, H), pl.ds(max_pad, W), :] = (
        x_ref[0].astype(jnp.float32))

    wall = w_ref[...]                    # (M, 9, C)
    ball = b_ref[...]                    # (M, C)
    u_total = None
    for m, d in enumerate(dilations):
        base = max_pad - d
        acc = None
        for uu in range(3):
            for vv in range(3):
                t = uu * 3 + vv
                # NOTE: W-offset slices are VMEM-local (scratch), no HBM cost.
                tap = pad_ref[pl.ds(base + uu * d, H),
                              pl.ds(base + vv * d, W), :]       # (H, W, C) f32
                term = tap * wall[m, t:t + 1, :]                # VPU, per-chan
                acc = term if acc is None else acc + term
        yb = jnp.maximum(acc + ball[m:m + 1, :], 0.0)           # (H, W, C) f32
        y_ref[m, 0] = yb.astype(y_ref.dtype)                    # store bf16
        u_total = yb if u_total is None else u_total + yb
    pooled = jnp.sum(u_total, axis=0)                           # (W, C)
    pooled = jnp.sum(pooled, axis=0, keepdims=True)             # (1, C)
    s_ref[0] = pooled * (1.0 / (H * W))


def dw_branches(x, w_dw, b_dw, dilations, max_pad):
    # TODO(synk): at large H*W also tile H into row blocks (halo rows + a
    # pooled-sum accumulator finalized on the last row tile) so the block fits
    # v7x's 64 MiB VMEM and both TensorCores are used at tiny batch.
    B, H, W, C = x.shape
    M = len(dilations)
    Hp, Wp = H + 2 * max_pad, W + 2 * max_pad
    kernel = functools.partial(_dw_branches_kernel, dilations=tuple(dilations),
                               H=H, W=W, max_pad=max_pad)
    y5, s = pl.pallas_call(
        kernel,
        out_shape=(jax.ShapeDtypeStruct((M, B, H, W, C), jnp.bfloat16),
                   jax.ShapeDtypeStruct((B, 1, C), jnp.float32)),
        grid_spec=pltpu.PrefetchScalarGridSpec(
            num_scalar_prefetch=0,
            grid=(B,),
            in_specs=[
                pl.BlockSpec((1, H, W, C), lambda b: (b, 0, 0, 0)),
                pl.BlockSpec((M, 9, C), lambda b: (0, 0, 0)),
                pl.BlockSpec((M, C), lambda b: (0, 0)),
            ],
            out_specs=[
                pl.BlockSpec((M, 1, H, W, C), lambda b: (0, b, 0, 0, 0)),
                pl.BlockSpec((1, 1, C), lambda b: (b, 0, 0)),
            ],
            scratch_shapes=[pltpu.VMEM((Hp, Wp, C), jnp.float32)],
        ),
        compiler_params=pltpu.CompilerParams(
            dimension_semantics=("parallel",),
            vmem_limit_bytes=_VMEM_LIMIT),
    )(x, w_dw, b_dw)
    return y5, s


# ----- fused attention-weighted branch fusion + conv3 (1x1 + BN, no act) -----

def _attend_conv3_kernel(y_ref, att_ref, w3_ref, b3_ref, o_ref, *, M):
    # y_ref: (M, 1, hw_t, C) bf16   att_ref: (1, M, C) f32 (softmax precomputed)
    # w3_ref: (C, bc) bf16          b3_ref: (1, bc)      o_ref: (1, hw_t, bc)
    att = att_ref[0]                                           # (M, C)
    v = att[0:1, :] * y_ref[0, 0].astype(jnp.float32)          # (hw_t, C)
    for m in range(1, M):
        v = v + att[m:m + 1, :] * y_ref[m, 0].astype(jnp.float32)
    out = jnp.dot(v.astype(w3_ref.dtype), w3_ref[...],
                  preferred_element_type=jnp.float32)
    o_ref[0] = out + b3_ref[...]


def attend_conv3(y, att, w3, bias3):
    # y: (M, B, HW, C) bf16  att: (B, M, C) f32  w3: (C, Cout)  bias3: (Cout,)
    M, B, HW, C = y.shape
    Cout = w3.shape[1]
    hw_t, HWp = _tile_pad(HW, 2048, 8)
    if HWp != HW:
        y = jnp.pad(y, ((0, 0), (0, 0), (0, HWp - HW), (0, 0)))
    # Never sub-tile the output lane dim below 128: keep Cout untiled when it
    # is small; only tile when large (multiples of 128).
    bc = Cout if Cout <= 256 else _pick_tile(Cout, 512, 128)
    w3b = w3.astype(jnp.bfloat16)
    b3 = bias3.reshape(1, Cout).astype(jnp.float32)
    kernel = functools.partial(_attend_conv3_kernel, M=M)
    out = pl.pallas_call(
        kernel,
        out_shape=jax.ShapeDtypeStruct((B, HWp, Cout), jnp.float32),
        grid_spec=pltpu.PrefetchScalarGridSpec(
            num_scalar_prefetch=0,
            grid=(B, HWp // hw_t, Cout // bc),
            in_specs=[
                pl.BlockSpec((M, 1, hw_t, C), lambda b, hh, cc: (0, b, hh, 0)),
                pl.BlockSpec((1, M, C), lambda b, hh, cc: (b, 0, 0)),
                pl.BlockSpec((C, bc), lambda b, hh, cc: (0, cc)),
                pl.BlockSpec((1, bc), lambda b, hh, cc: (0, cc)),
            ],
            out_specs=pl.BlockSpec((1, hw_t, bc), lambda b, hh, cc: (b, hh, cc)),
        ),
        compiler_params=pltpu.CompilerParams(
            dimension_semantics=("parallel", "parallel", "parallel"),
            vmem_limit_bytes=_VMEM_LIMIT),
    )(y, att, w3b, b3)
    return out[:, :HW, :] if HWp != HW else out


# --------------------- fallback: general grouped 3x3 conv --------------------
# TODO(synk): non-depthwise / strided grouped conv still uses a block-diagonal
# masked dense matmul over an im2col copy (not exercised by the demo config).

def grouped_conv3x3_fallback(x, w_cols, bias, *, stride, dilation):
    B, H, W, Cin = x.shape
    pad = dilation
    xp = jnp.pad(x, ((0, 0), (pad, pad), (pad, pad), (0, 0)))
    Ho = (H + 2 * pad - 2 * dilation - 1) // stride + 1
    Wo = (W + 2 * pad - 2 * dilation - 1) // stride + 1
    cols = []
    for u in range(3):
        for v in range(3):
            sl = xp[:,
                    u * dilation: u * dilation + (Ho - 1) * stride + 1: stride,
                    v * dilation: v * dilation + (Wo - 1) * stride + 1: stride,
                    :]
            cols.append(sl.reshape(B * Ho * Wo, Cin))
    x_cols = jnp.concatenate(cols, axis=1)                     # (N, 9*Cin)
    out = matmul_bias_act(x_cols, w_cols, bias, relu=True,
                          out_dtype=jnp.bfloat16)
    return out.reshape(B, Ho, Wo, -1), Ho, Wo


# ----------------------------- parameter creation ----------------------------

def _init_bn(key, c):
    k1, k2, k3, k4 = jax.random.split(key, 4)
    gamma = 1.0 + 0.1 * jax.random.normal(k1, (c,), jnp.float32)
    beta = 0.05 * jax.random.normal(k2, (c,), jnp.float32)
    mean = 0.1 * jax.random.normal(k3, (c,), jnp.float32)
    var = jax.random.uniform(k4, (c,), jnp.float32, 0.5, 1.5)
    return gamma, beta, mean, var


def _conv1x1_block_params(key, cin, cout):
    k1, k2 = jax.random.split(key)
    w = 0.1 * jax.random.normal(k1, (cin, cout), jnp.float32)
    gamma, beta, mean, var = _init_bn(k2, cout)
    scale = gamma / jnp.sqrt(var + 1e-5)
    return w * scale[None, :], beta - mean * scale


def _dw3x3_block_params(key, c):
    # depthwise 3x3 (PyTorch weight (C,1,3,3)) + BN folded, kept in f32.
    k1, k2 = jax.random.split(key)
    w = 0.1 * jax.random.normal(k1, (c, 3, 3), jnp.float32)
    gamma, beta, mean, var = _init_bn(k2, c)
    scale = gamma / jnp.sqrt(var + 1e-5)
    w_taps = jnp.transpose(w, (1, 2, 0)).reshape(9, c) * scale[None, :]
    return w_taps, beta - mean * scale


def _grouped3x3_block_params(key, cin, cout, groups):
    # block-diagonal (group-masked) dense weight, BN folded in f32.
    k1, k2 = jax.random.split(key)
    cin_g, cg_out = cin // groups, cout // groups
    w_t = np.asarray(0.1 * jax.random.normal(k1, (cout, cin_g, 3, 3), jnp.float32))
    dense = np.zeros((3, 3, cin, cout), np.float32)
    for o in range(cout):
        g = o // cg_out
        dense[:, :, g * cin_g:(g + 1) * cin_g, o] = np.transpose(w_t[o], (1, 2, 0))
    gamma, beta, mean, var = _init_bn(k2, cout)
    scale = np.asarray(gamma / jnp.sqrt(var + 1e-5))
    dense = dense * scale[None, None, None, :]
    bias = np.asarray(beta) - np.asarray(mean) * scale
    return jnp.asarray(dense.reshape(9 * cin, cout)), jnp.asarray(bias)


def make_sknet_bottleneck_params(key, in_c, out_c, stride, *, groups=32,
                                 num_branches=2, reduction=16, min_channels=32,
                                 bottleneck_factor=2):
    mid_c = out_c // bottleneck_factor
    mid_sk = max(mid_c // reduction, min_channels)
    ks = iter(jax.random.split(key, 4 + num_branches))
    params = {"conv1": _conv1x1_block_params(next(ks), in_c, mid_c)}
    use_dw = (groups == mid_c) and (stride == 1)
    if use_dw:
        dw = [_dw3x3_block_params(next(ks), mid_c) for _ in range(num_branches)]
        params["dw"] = (jnp.stack([w for w, _ in dw], 0),     # (M, 9, C)
                        jnp.stack([b for _, b in dw], 0))     # (M, C)
        params["grouped"] = None
    else:
        params["dw"] = None
        params["grouped"] = [
            _grouped3x3_block_params(next(ks), mid_c, mid_c, groups)
            for _ in range(num_branches)]
    params["fc1"] = _conv1x1_block_params(next(ks), mid_c, mid_sk)
    params["fc2"] = 0.1 * jax.random.normal(next(ks), (mid_sk, mid_c * num_branches),
                                            jnp.float32)   # conv1x1, bias=False
    params["conv3"] = _conv1x1_block_params(next(ks), mid_c, out_c)
    params["cfg"] = dict(stride=stride, num_branches=num_branches,
                         mid_c=mid_c, out_c=out_c)
    return params


# -------------------------------- forward pass -------------------------------

def sknet_bottleneck_forward(x_nchw, params):
    cfg = params["cfg"]
    stride, M = cfg["stride"], cfg["num_branches"]
    mid_c, out_c = cfg["mid_c"], cfg["out_c"]
    dilations = tuple(range(1, M + 1))

    x = jnp.transpose(x_nchw, (0, 2, 3, 1)).astype(jnp.float32)   # NHWC
    B, H, W, _ = x.shape

    # conv1: 1x1 conv + BN + ReLU -> bf16 intermediate (halves the HBM stream)
    w1, b1 = params["conv1"]
    h = conv1x1(x, w1, b1, relu=True, out_dtype=jnp.bfloat16)     # (B,H,W,mid)

    # conv2: SKConvBlock branches (+ pool fused in one kernel on the fast path)
    if params["dw"] is not None:
        max_pad = max(dilations)
        w_dw, b_dw = params["dw"]
        y5, s = dw_branches(h, w_dw, b_dw, dilations, max_pad)
        Ho, Wo = H, W
        y = y5.reshape(M, B, Ho * Wo, mid_c)                      # bf16
        s = s.reshape(B, mid_c)
    else:
        ys = []
        for bi, d in enumerate(dilations):
            wg, bg = params["grouped"][bi]
            yb, Ho, Wo = grouped_conv3x3_fallback(h, wg, bg,
                                                  stride=stride, dilation=d)
            ys.append(yb.reshape(B, Ho * Wo, mid_c))
        y = jnp.stack(ys, axis=0)                                 # (M,B,HW,C) bf16
        s = jnp.mean(y.astype(jnp.float32).sum(axis=0), axis=1)   # (B, C)

    # SK attention MLP + branch softmax: tiny (B x 32) -> plain XLA, so the
    # softmax is computed once per batch element instead of per grid cell and
    # there is no launch-overhead-only pallas_call.
    wf1, bf1 = params["fc1"]
    z = jnp.maximum(s @ wf1 + bf1, 0.0)
    logits = (z @ params["fc2"]).reshape(B, M, mid_c)
    att = jax.nn.softmax(logits, axis=1)                          # (B, M, C)

    # attention-weighted branch sum + conv3 (1x1+BN, no act), fused
    w3, b3 = params["conv3"]
    out = attend_conv3(y, att, w3, b3)                            # (B, HW, out_c)
    return jnp.transpose(out.reshape(B, Ho, Wo, out_c), (0, 3, 1, 2))   # NCHW


# ----------------------- pure-JAX reference (f32, no Pallas) -----------------

def _reference_forward(x_nchw, params):
    cfg = params["cfg"]
    M, mid_c, out_c = cfg["num_branches"], cfg["mid_c"], cfg["out_c"]
    dils = tuple(range(1, M + 1))
    x = jnp.transpose(x_nchw, (0, 2, 3, 1)).astype(jnp.float32)
    B, H, W, _ = x.shape
    w1, b1 = params["conv1"]
    h = jnp.maximum(x @ w1 + b1, 0.0)
    w_dw, b_dw = params["dw"]
    ys = []
    for m, d in enumerate(dils):
        hp = jnp.pad(h, ((0, 0), (d, d), (d, d), (0, 0)))
        acc = jnp.zeros_like(h)
        for uu in range(3):
            for vv in range(3):
                t = uu * 3 + vv
                tap = hp[:, uu * d:uu * d + H, vv * d:vv * d + W, :]
                acc = acc + tap * w_dw[m, t]
        ys.append(jnp.maximum(acc + b_dw[m], 0.0))
    y = jnp.stack(ys, 0)                                          # (M,B,H,W,C)
    s = y.sum(0).mean(axis=(1, 2))                                # (B, C)
    wf1, bf1 = params["fc1"]
    z = jnp.maximum(s @ wf1 + bf1, 0.0)
    logits = (z @ params["fc2"]).reshape(B, M, mid_c)
    att = jax.nn.softmax(logits, axis=1)
    v = (y * jnp.transpose(att, (1, 0, 2))[:, :, None, None, :]).sum(0)
    w3, b3 = params["conv3"]
    out = v @ w3 + b3
    return jnp.transpose(out, (0, 3, 1, 2))


# ------------------------------------ main -----------------------------------

if __name__ == "__main__":
    key = jax.random.PRNGKey(0)
    kx, kp = jax.random.split(key)

    # in_channels=32, out_channels=64, stride=1 -> mid=32, groups=32 (depthwise)
    B, Cin, H, W = 2, 32, 8, 8
    x = jax.random.normal(kx, (B, Cin, H, W), jnp.float32)

    params = make_sknet_bottleneck_params(kp, in_c=Cin, out_c=64, stride=1)

    fwd = jax.jit(functools.partial(sknet_bottleneck_forward, params=params))
    out = jax.block_until_ready(fwd(x))

    assert out.shape == (B, 64, H, W), out.shape
    assert bool(jnp.all(jnp.isfinite(out)))

    # Loose tolerance: kernels use bf16 intermediates vs. f32 reference.
    ref = _reference_forward(x, params)
    max_err = float(jnp.max(jnp.abs(out - ref)))
    assert max_err < 1e-1, max_err

    print("KERNEL_OK")
</pallas_src>

<mosaic_0001>
module attributes {stable_mosaic.version = 11 : i64} {
  func.func @_dw_branches_kernel(%arg0: i32, %arg1: memref<1x8x8x32xbf16, #tpu.memory_space<vmem>>, %arg2: memref<2x9x32xf32, #tpu.memory_space<vmem>>, %arg3: memref<2x32xf32, #tpu.memory_space<vmem>>, %arg4: memref<2x1x8x8x32xbf16, #tpu.memory_space<vmem>>, %arg5: memref<1x1x32xf32, #tpu.memory_space<vmem>>, %arg6: memref<12x12x32xf32, #tpu.memory_space<vmem>>) attributes {dimension_semantics = [#tpu.dimension_semantics<parallel>], iteration_bounds = array<i64: 2>, scalar_prefetch = 0 : i64, scratch_operands = 1 : i64, tpu.core_type = #tpu.core_type<tc>, window_params = [{transform_indices = @transform_0, window_bounds = array<i64: 1, 8, 8, 32>}, {pipeline_mode = #tpu.pipeline_mode<synchronous>, transform_indices = @transform_1, window_bounds = array<i64: 2, 9, 32>}, {pipeline_mode = #tpu.pipeline_mode<synchronous>, transform_indices = @transform_2, window_bounds = array<i64: 2, 32>}, {transform_indices = @transform_3, window_bounds = array<i64: 2, 1, 8, 8, 32>}, {transform_indices = @transform_4, window_bounds = array<i64: 1, 1, 32>}]} {
    %cst = arith.constant 0.000000e+00 : f32
    %0 = vector.broadcast %cst : f32 to vector<12x12x32xf32>
    %c0 = arith.constant 0 : index
    %c0_0 = arith.constant 0 : index
    %c0_1 = arith.constant 0 : index
    %1 = vector.load %arg6[%c0, %c0_0, %c0_1] : memref<12x12x32xf32, #tpu.memory_space<vmem>>, vector<12x12x32xf32>
    tpu.vector_store %arg6[%c0, %c0_0, %c0_1], %0 {strides = array<i32>} : memref<12x12x32xf32, #tpu.memory_space<vmem>>, vector<12x12x32xf32>,
    %c0_2 = arith.constant 0 : index
    %c0_3 = arith.constant 0 : index
    %c0_4 = arith.constant 0 : index
    %c0_5 = arith.constant 0 : index
    %2 = vector.load %arg1[%c0_2, %c0_3, %c0_4, %c0_5] : memref<1x8x8x32xbf16, #tpu.memory_space<vmem>>, vector<1x8x8x32xbf16>
    %3 = vector.shape_cast %2 : vector<1x8x8x32xbf16> to vector<8x8x32xbf16>
    %4 = arith.extf %3 : vector<8x8x32xbf16> to vector<8x8x32xf32>
    %c2 = arith.constant 2 : index
    %c2_6 = arith.constant 2 : index
    %c0_7 = arith.constant 0 : index
    %5 = vector.load %arg6[%c2, %c2_6, %c0_7] : memref<12x12x32xf32, #tpu.memory_space<vmem>>, vector<8x8x32xf32>
    tpu.vector_store %arg6[%c2, %c2_6, %c0_7], %4 {strides = array<i32>} : memref<12x12x32xf32, #tpu.memory_space<vmem>>, vector<8x8x32xf32>,
    %c0_8 = arith.constant 0 : index
    %c0_9 = arith.constant 0 : index
    %c0_10 = arith.constant 0 : index
    %6 = vector.load %arg2[%c0_8, %c0_9, %c0_10] : memref<2x9x32xf32, #tpu.memory_space<vmem>>, vector<2x9x32xf32>
    %c0_11 = arith.constant 0 : index
    %c0_12 = arith.constant 0 : index
    %7 = vector.load %arg3[%c0_11, %c0_12] : memref<2x32xf32, #tpu.memory_space<vmem>>, vector<2x32xf32>
    %c1 = arith.constant 1 : index
    %c1_13 = arith.constant 1 : index
    %c0_14 = arith.constant 0 : index
    %8 = vector.load %arg6[%c1, %c1_13, %c0_14] : memref<12x12x32xf32, #tpu.memory_space<vmem>>, vector<8x8x32xf32>
    %9 = vector.extract_strided_slice %6 {offsets = [0, 0, 0], sizes = [1, 1, 32], strides = [1, 1, 1]} : vector<2x9x32xf32> to vector<1x1x32xf32>
    %10 = vector.shape_cast %9 : vector<1x1x32xf32> to vector<1x32xf32>
    %11 = vector.shape_cast %10 : vector<1x32xf32> to vector<1x1x32xf32>
    %12 = vector.broadcast %11 : vector<1x1x32xf32> to vector<8x8x32xf32>
    %13 = arith.mulf %8, %12 : vector<8x8x32xf32>
    %c1_15 = arith.constant 1 : index
    %c2_16 = arith.constant 2 : index
    %c0_17 = arith.constant 0 : index
    %14 = vector.load %arg6[%c1_15, %c2_16, %c0_17] : memref<12x12x32xf32, #tpu.memory_space<vmem>>, vector<8x8x32xf32>
    %15 = vector.extract_strided_slice %6 {offsets = [0, 1, 0], sizes = [1, 1, 32], strides = [1, 1, 1]} : vector<2x9x32xf32> to vector<1x1x32xf32>
    %16 = vector.shape_cast %15 : vector<1x1x32xf32> to vector<1x32xf32>
    %17 = vector.shape_cast %16 : vector<1x32xf32> to vector<1x1x32xf32>
    %18 = vector.broadcast %17 : vector<1x1x32xf32> to vector<8x8x32xf32>
    %19 = arith.mulf %14, %18 : vector<8x8x32xf32>
    %20 = arith.addf %13, %19 : vector<8x8x32xf32>
    %c1_18 = arith.constant 1 : index
    %c3 = arith.constant 3 : index
    %c0_19 = arith.constant 0 : index
    %21 = vector.load %arg6[%c1_18, %c3, %c0_19] : memref<12x12x32xf32, #tpu.memory_space<vmem>>, vector<8x8x32xf32>
    %22 = vector.extract_strided_slice %6 {offsets = [0, 2, 0], sizes = [1, 1, 32], strides = [1, 1, 1]} : vector<2x9x32xf32> to vector<1x1x32xf32>
    %23 = vector.shape_cast %22 : vector<1x1x32xf32> to vector<1x32xf32>
    %24 = vector.shape_cast %23 : vector<1x32xf32> to vector<1x1x32xf32>
    %25 = vector.broadcast %24 : vector<1x1x32xf32> to vector<8x8x32xf32>
    %26 = arith.mulf %21, %25 : vector<8x8x32xf32>
    %27 = arith.addf %20, %26 : vector<8x8x32xf32>
    %c2_20 = arith.constant 2 : index
    %c1_21 = arith.constant 1 : index
    %c0_22 = arith.constant 0 : index
    %28 = vector.load %arg6[%c2_20, %c1_21, %c0_22] : memref<12x12x32xf32, #tpu.memory_space<vmem>>, vector<8x8x32xf32>
    %29 = vector.extract_strided_slice %6 {offsets = [0, 3, 0], sizes = [1, 1, 32], strides = [1, 1, 1]} : vector<2x9x32xf32> to vector<1x1x32xf32>
    %30 = vector.shape_cast %29 : vector<1x1x32xf32> to vector<1x32xf32>
    %31 = vector.shape_cast %30 : vector<1x32xf32> to vector<1x1x32xf32>
    %32 = vector.broadcast %31 : vector<1x1x32xf32> to vector<8x8x32xf32>
    %33 = arith.mulf %28, %32 : vector<8x8x32xf32>
    %34 = arith.addf %27, %33 : vector<8x8x32xf32>
    %c2_23 = arith.constant 2 : index
    %c2_24 = arith.constant 2 : index
    %c0_25 = arith.constant 0 : index
    %35 = vector.load %arg6[%c2_23, %c2_24, %c0_25] : memref<12x12x32xf32, #tpu.memory_space<vmem>>, vector<8x8x32xf32>
    %36 = vector.extract_strided_slice %6 {offsets = [0, 4, 0], sizes = [1, 1, 32], strides = [1, 1, 1]} : vector<2x9x32xf32> to vector<1x1x32xf32>
    %37 = vector.shape_cast %36 : vector<1x1x32xf32> to vector<1x32xf32>
    %38 = vector.shape_cast %37 : vector<1x32xf32> to vector<1x1x32xf32>
    %39 = vector.broadcast %38 : vector<1x1x32xf32> to vector<8x8x32xf32>
    %40 = arith.mulf %35, %39 : vector<8x8x32xf32>
    %41 = arith.addf %34, %40 : vector<8x8x32xf32>
    %c2_26 = arith.constant 2 : index
    %c3_27 = arith.constant 3 : index
    %c0_28 = arith.constant 0 : index
    %42 = vector.load %arg6[%c2_26, %c3_27, %c0_28] : memref<12x12x32xf32, #tpu.memory_space<vmem>>, vector<8x8x32xf32>
    %43 = vector.extract_strided_slice %6 {offsets = [0, 5, 0], sizes = [1, 1, 32], strides = [1, 1, 1]} : vector<2x9x32xf32> to vector<1x1x32xf32>
    %44 = vector.shape_cast %43 : vector<1x1x32xf32> to vector<1x32xf32>
    %45 = vector.shape_cast %44 : vector<1x32xf32> to vector<1x1x32xf32>
    %46 = vector.broadcast %45 : vector<1x1x32xf32> to vector<8x8x32xf32>
    %47 = arith.mulf %42, %46 : vector<8x8x32xf32>
    %48 = arith.addf %41, %47 : vector<8x8x32xf32>
    %c3_29 = arith.constant 3 : index
    %c1_30 = arith.constant 1 : index
    %c0_31 = arith.constant 0 : index
    %49 = vector.load %arg6[%c3_29, %c1_30, %c0_31] : memref<12x12x32xf32, #tpu.memory_space<vmem>>, vector<8x8x32xf32>
    %50 = vector.extract_strided_slice %6 {offsets = [0, 6, 0], sizes = [1, 1, 32], strides = [1, 1, 1]} : vector<2x9x32xf32> to vector<1x1x32xf32>
    %51 = vector.shape_cast %50 : vector<1x1x32xf32> to vector<1x32xf32>
    %52 = vector.shape_cast %51 : vector<1x32xf32> to vector<1x1x32xf32>
    %53 = vector.broadcast %52 : vector<1x1x32xf32> to vector<8x8x32xf32>
    %54 = arith.mulf %49, %53 : vector<8x8x32xf32>
    %55 = arith.addf %48, %54 : vector<8x8x32xf32>
    %c3_32 = arith.constant 3 : index
    %c2_33 = arith.constant 2 : index
    %c0_34 = arith.constant 0 : index
    %56 = vector.load %arg6[%c3_32, %c2_33, %c0_34] : memref<12x12x32xf32, #tpu.memory_space<vmem>>, vector<8x8x32xf32>
    %57 = vector.extract_strided_slice %6 {offsets = [0, 7, 0], sizes = [1, 1, 32], strides = [1, 1, 1]} : vector<2x9x32xf32> to vector<1x1x32xf32>
    %58 = vector.shape_cast %57 : vector<1x1x32xf32> to vector<1x32xf32>
    %59 = vector.shape_cast %58 : vector<1x32xf32> to vector<1x1x32xf32>
    %60 = vector.broadcast %59 : vector<1x1x32xf32> to vector<8x8x32xf32>
    %61 = arith.mulf %56, %60 : vector<8x8x32xf32>
    %62 = arith.addf %55, %61 : vector<8x8x32xf32>
    %c3_35 = arith.constant 3 : index
    %c3_36 = arith.constant 3 : index
    %c0_37 = arith.constant 0 : index
    %63 = vector.load %arg6[%c3_35, %c3_36, %c0_37] : memref<12x12x32xf32, #tpu.memory_space<vmem>>, vector<8x8x32xf32>
    %64 = vector.extract_strided_slice %6 {offsets = [0, 8, 0], sizes = [1, 1, 32], strides = [1, 1, 1]} : vector<2x9x32xf32> to vector<1x1x32xf32>
    %65 = vector.shape_cast %64 : vector<1x1x32xf32> to vector<1x32xf32>
    %66 = vector.shape_cast %65 : vector<1x32xf32> to vector<1x1x32xf32>
    %67 = vector.broadcast %66 : vector<1x1x32xf32> to vector<8x8x32xf32>
    %68 = arith.mulf %63, %67 : vector<8x8x32xf32>
    %69 = arith.addf %62, %68 : vector<8x8x32xf32>
    %70 = vector.extract_strided_slice %7 {offsets = [0, 0], sizes = [1, 32], strides = [1, 1]} : vector<2x32xf32> to vector<1x32xf32>
    %71 = vector.shape_cast %70 : vector<1x32xf32> to vector<1x1x32xf32>
    %72 = vector.broadcast %71 : vector<1x1x32xf32> to vector<8x8x32xf32>
    %73 = arith.addf %69, %72 : vector<8x8x32xf32>
    %cst_38 = arith.constant 0.000000e+00 : f32
    %74 = vector.broadcast %cst_38 : f32 to vector<8x8x32xf32>
    %75 = arith.maximumf %73, %74 : vector<8x8x32xf32>
    %76 = arith.truncf %75 : vector<8x8x32xf32> to vector<8x8x32xbf16>
    %c0_39 = arith.constant 0 : index
    %c0_40 = arith.constant 0 : index
    %c0_41 = arith.constant 0 : index
    %c0_42 = arith.constant 0 : index
    %c0_43 = arith.constant 0 : index
    %77 = vector.load %arg4[%c0_39, %c0_40, %c0_41, %c0_42, %c0_43] : memref<2x1x8x8x32xbf16, #tpu.memory_space<vmem>>, vector<1x1x8x8x32xbf16>
    %78 = vector.shape_cast %77 : vector<1x1x8x8x32xbf16> to vector<8x8x32xbf16>
    %79 = vector.shape_cast %76 : vector<8x8x32xbf16> to vector<1x1x8x8x32xbf16>
    tpu.vector_store %arg4[%c0_39, %c0_40, %c0_41, %c0_42, %c0_43], %79 {strides = array<i32>} : memref<2x1x8x8x32xbf16, #tpu.memory_space<vmem>>, vector<1x1x8x8x32xbf16>,
    %c0_44 = arith.constant 0 : index
    %c0_45 = arith.constant 0 : index
    %c0_46 = arith.constant 0 : index
    %80 = vector.load %arg6[%c0_44, %c0_45, %c0_46] : memref<12x12x32xf32, #tpu.memory_space<vmem>>, vector<8x8x32xf32>
    %81 = vector.extract_strided_slice %6 {offsets = [1, 0, 0], sizes = [1, 1, 32], strides = [1, 1, 1]} : vector<2x9x32xf32> to vector<1x1x32xf32>
    %82 = vector.shape_cast %81 : vector<1x1x32xf32> to vector<1x32xf32>
    %83 = vector.shape_cast %82 : vector<1x32xf32> to vector<1x1x32xf32>
    %84 = vector.broadcast %83 : vector<1x1x32xf32> to vector<8x8x32xf32>
    %85 = arith.mulf %80, %84 : vector<8x8x32xf32>
    %c0_47 = arith.constant 0 : index
    %c2_48 = arith.constant 2 : index
    %c0_49 = arith.constant 0 : index
    %86 = vector.load %arg6[%c0_47, %c2_48, %c0_49] : memref<12x12x32xf32, #tpu.memory_space<vmem>>, vector<8x8x32xf32>
    %87 = vector.extract_strided_slice %6 {offsets = [1, 1, 0], sizes = [1, 1, 32], strides = [1, 1, 1]} : vector<2x9x32xf32> to vector<1x1x32xf32>
    %88 = vector.shape_cast %87 : vector<1x1x32xf32> to vector<1x32xf32>
    %89 = vector.shape_cast %88 : vector<1x32xf32> to vector<1x1x32xf32>
    %90 = vector.broadcast %89 : vector<1x1x32xf32> to vector<8x8x32xf32>
    %91 = arith.mulf %86, %90 : vector<8x8x32xf32>
    %92 = arith.addf %85, %91 : vector<8x8x32xf32>
    %c0_50 = arith.constant 0 : index
    %c4 = arith.constant 4 : index
    %c0_51 = arith.constant 0 : index
    %93 = vector.load %arg6[%c0_50, %c4, %c0_51] : memref<12x12x32xf32, #tpu.memory_space<vmem>>, vector<8x8x32xf32>
    %94 = vector.extract_strided_slice %6 {offsets = [1, 2, 0], sizes = [1, 1, 32], strides = [1, 1, 1]} : vector<2x9x32xf32> to vector<1x1x32xf32>
    %95 = vector.shape_cast %94 : vector<1x1x32xf32> to vector<1x32xf32>
    %96 = vector.shape_cast %95 : vector<1x32xf32> to vector<1x1x32xf32>
    %97 = vector.broadcast %96 : vector<1x1x32xf32> to vector<8x8x32xf32>
    %98 = arith.mulf %93, %97 : vector<8x8x32xf32>
    %99 = arith.addf %92, %98 : vector<8x8x32xf32>
    %c2_52 = arith.constant 2 : index
    %c0_53 = arith.constant 0 : index
    %c0_54 = arith.constant 0 : index
    %100 = vector.load %arg6[%c2_52, %c0_53, %c0_54] : memref<12x12x32xf32, #tpu.memory_space<vmem>>, vector<8x8x32xf32>
    %101 = vector.extract_strided_slice %6 {offsets = [1, 3, 0], sizes = [1, 1, 32], strides = [1, 1, 1]} : vector<2x9x32xf32> to vector<1x1x32xf32>
    %102 = vector.shape_cast %101 : vector<1x1x32xf32> to vector<1x32xf32>
    %103 = vector.shape_cast %102 : vector<1x32xf32> to vector<1x1x32xf32>
    %104 = vector.broadcast %103 : vector<1x1x32xf32> to vector<8x8x32xf32>
    %105 = arith.mulf %100, %104 : vector<8x8x32xf32>
    %106 = arith.addf %99, %105 : vector<8x8x32xf32>
    %c2_55 = arith.constant 2 : index
    %c2_56 = arith.constant 2 : index
    %c0_57 = arith.constant 0 : index
    %107 = vector.load %arg6[%c2_55, %c2_56, %c0_57] : memref<12x12x32xf32, #tpu.memory_space<vmem>>, vector<8x8x32xf32>
    %108 = vector.extract_strided_slice %6 {offsets = [1, 4, 0], sizes = [1, 1, 32], strides = [1, 1, 1]} : vector<2x9x32xf32> to vector<1x1x32xf32>
    %109 = vector.shape_cast %108 : vector<1x1x32xf32> to vector<1x32xf32>
    %110 = vector.shape_cast %109 : vector<1x32xf32> to vector<1x1x32xf32>
    %111 = vector.broadcast %110 : vector<1x1x32xf32> to vector<8x8x32xf32>
    %112 = arith.mulf %107, %111 : vector<8x8x32xf32>
    %113 = arith.addf %106, %112 : vector<8x8x32xf32>
    %c2_58 = arith.constant 2 : index
    %c4_59 = arith.constant 4 : index
    %c0_60 = arith.constant 0 : index
    %114 = vector.load %arg6[%c2_58, %c4_59, %c0_60] : memref<12x12x32xf32, #tpu.memory_space<vmem>>, vector<8x8x32xf32>
    %115 = vector.extract_strided_slice %6 {offsets = [1, 5, 0], sizes = [1, 1, 32], strides = [1, 1, 1]} : vector<2x9x32xf32> to vector<1x1x32xf32>
    %116 = vector.shape_cast %115 : vector<1x1x32xf32> to vector<1x32xf32>
    %117 = vector.shape_cast %116 : vector<1x32xf32> to vector<1x1x32xf32>
    %118 = vector.broadcast %117 : vector<1x1x32xf32> to vector<8x8x32xf32>
    %119 = arith.mulf %114, %118 : vector<8x8x32xf32>
    %120 = arith.addf %113, %119 : vector<8x8x32xf32>
    %c4_61 = arith.constant 4 : index
    %c0_62 = arith.constant 0 : index
    %c0_63 = arith.constant 0 : index
    %121 = vector.load %arg6[%c4_61, %c0_62, %c0_63] : memref<12x12x32xf32, #tpu.memory_space<vmem>>, vector<8x8x32xf32>
    %122 = vector.extract_strided_slice %6 {offsets = [1, 6, 0], sizes = [1, 1, 32], strides = [1, 1, 1]} : vector<2x9x32xf32> to vector<1x1x32xf32>
    %123 = vector.shape_cast %122 : vector<1x1x32xf32> to vector<1x32xf32>
    %124 = vector.shape_cast %123 : vector<1x32xf32> to vector<1x1x32xf32>
    %125 = vector.broadcast %124 : vector<1x1x32xf32> to vector<8x8x32xf32>
    %126 = arith.mulf %121, %125 : vector<8x8x32xf32>
    %127 = arith.addf %120, %126 : vector<8x8x32xf32>
    %c4_64 = arith.constant 4 : index
    %c2_65 = arith.constant 2 : index
    %c0_66 = arith.constant 0 : index
    %128 = vector.load %arg6[%c4_64, %c2_65, %c0_66] : memref<12x12x32xf32, #tpu.memory_space<vmem>>, vector<8x8x32xf32>
    %129 = vector.extract_strided_slice %6 {offsets = [1, 7, 0], sizes = [1, 1, 32], strides = [1, 1, 1]} : vector<2x9x32xf32> to vector<1x1x32xf32>
    %130 = vector.shape_cast %129 : vector<1x1x32xf32> to vector<1x32xf32>
    %131 = vector.shape_cast %130 : vector<1x32xf32> to vector<1x1x32xf32>
    %132 = vector.broadcast %131 : vector<1x1x32xf32> to vector<8x8x32xf32>
    %133 = arith.mulf %128, %132 : vector<8x8x32xf32>
    %134 = arith.addf %127, %133 : vector<8x8x32xf32>
    %c4_67 = arith.constant 4 : index
    %c4_68 = arith.constant 4 : index
    %c0_69 = arith.constant 0 : index
    %135 = vector.load %arg6[%c4_67, %c4_68, %c0_69] : memref<12x12x32xf32, #tpu.memory_space<vmem>>, vector<8x8x32xf32>
    %136 = vector.extract_strided_slice %6 {offsets = [1, 8, 0], sizes = [1, 1, 32], strides = [1, 1, 1]} : vector<2x9x32xf32> to vector<1x1x32xf32>
    %137 = vector.shape_cast %136 : vector<1x1x32xf32> to vector<1x32xf32>
    %138 = vector.shape_cast %137 : vector<1x32xf32> to vector<1x1x32xf32>
    %139 = vector.broadcast %138 : vector<1x1x32xf32> to vector<8x8x32xf32>
    %140 = arith.mulf %135, %139 : vector<8x8x32xf32>
    %141 = arith.addf %134, %140 : vector<8x8x32xf32>
    %142 = vector.extract_strided_slice %7 {offsets = [1, 0], sizes = [1, 32], strides = [1, 1]} : vector<2x32xf32> to vector<1x32xf32>
    %143 = vector.shape_cast %142 : vector<1x32xf32> to vector<1x1x32xf32>
    %144 = vector.broadcast %143 : vector<1x1x32xf32> to vector<8x8x32xf32>
    %145 = arith.addf %141, %144 : vector<8x8x32xf32>
    %cst_70 = arith.constant 0.000000e+00 : f32
    %146 = vector.broadcast %cst_70 : f32 to vector<8x8x32xf32>
    %147 = arith.maximumf %145, %146 : vector<8x8x32xf32>
    %148 = arith.truncf %147 : vector<8x8x32xf32> to vector<8x8x32xbf16>
    %c1_71 = arith.constant 1 : index
    %c0_72 = arith.constant 0 : index
    %c0_73 = arith.constant 0 : index
    %c0_74 = arith.constant 0 : index
    %c0_75 = arith.constant 0 : index
    %149 = vector.load %arg4[%c1_71, %c0_72, %c0_73, %c0_74, %c0_75] : memref<2x1x8x8x32xbf16, #tpu.memory_space<vmem>>, vector<1x1x8x8x32xbf16>
    %150 = vector.shape_cast %149 : vector<1x1x8x8x32xbf16> to vector<8x8x32xbf16>
    %151 = vector.shape_cast %148 : vector<8x8x32xbf16> to vector<1x1x8x8x32xbf16>
    tpu.vector_store %arg4[%c1_71, %c0_72, %c0_73, %c0_74, %c0_75], %151 {strides = array<i32>} : memref<2x1x8x8x32xbf16, #tpu.memory_space<vmem>>, vector<1x1x8x8x32xbf16>,
    %152 = arith.addf %75, %147 : vector<8x8x32xf32>
    %cst_76 = arith.constant dense<0.000000e+00> : vector<8x32xf32>
    %153 = vector.multi_reduction <add>, %152, %cst_76 [0] : vector<8x8x32xf32> to vector<8x32xf32>
    %cst_77 = arith.constant dense<0.000000e+00> : vector<32xf32>
    %154 = vector.multi_reduction <add>, %153, %cst_77 [0] : vector<8x32xf32> to vector<32xf32>
    %155 = vector.shape_cast %154 : vector<32xf32> to vector<1x32xf32>
    %cst_78 = arith.constant 1.562500e-02 : f32
    %156 = vector.broadcast %cst_78 : f32 to vector<1x32xf32>
    %157 = arith.mulf %155, %156 : vector<1x32xf32>
    %c0_79 = arith.constant 0 : index
    %c0_80 = arith.constant 0 : index
    %c0_81 = arith.constant 0 : index
    %158 = vector.load %arg5[%c0_79, %c0_80, %c0_81] : memref<1x1x32xf32, #tpu.memory_space<vmem>>, vector<1x1x32xf32>
    %159 = vector.shape_cast %158 : vector<1x1x32xf32> to vector<1x32xf32>
    %160 = vector.shape_cast %157 : vector<1x32xf32> to vector<1x1x32xf32>
    tpu.vector_store %arg5[%c0_79, %c0_80, %c0_81], %160 {strides = array<i32>} : memref<1x1x32xf32, #tpu.memory_space<vmem>>, vector<1x1x32xf32>,
    return
  }
  func.func @transform_0(%arg0: i32) -> (i32, i32, i32, i32) {
    %c0_i32 = arith.constant 0 : i32
    %c0_i32_0 = arith.constant 0 : i32
    %c0_i32_1 = arith.constant 0 : i32
    %c0_i32_2 = arith.constant 0 : i32
    return %arg0, %c0_i32, %c0_i32_0, %c0_i32_1 : i32, i32, i32, i32
  }
  func.func @transform_1(%arg0: i32) -> (i32, i32, i32) {
    %c0_i32 = arith.constant 0 : i32
    %c0_i32_0 = arith.constant 0 : i32
    %c0_i32_1 = arith.constant 0 : i32
    %c0_i32_2 = arith.constant 0 : i32
    return %c0_i32, %c0_i32_0, %c0_i32_1 : i32, i32, i32
  }
  func.func @transform_2(%arg0: i32) -> (i32, i32) {
    %c0_i32 = arith.constant 0 : i32
    %c0_i32_0 = arith.constant 0 : i32
    %c0_i32_1 = arith.constant 0 : i32
    return %c0_i32, %c0_i32_0 : i32, i32
  }
  func.func @transform_3(%arg0: i32) -> (i32, i32, i32, i32, i32) {
    %c0_i32 = arith.constant 0 : i32
    %c0_i32_0 = arith.constant 0 : i32
    %c0_i32_1 = arith.constant 0 : i32
    %c0_i32_2 = arith.constant 0 : i32
    %c0_i32_3 = arith.constant 0 : i32
    return %c0_i32, %arg0, %c0_i32_0, %c0_i32_1, %c0_i32_2 : i32, i32, i32, i32, i32
  }
  func.func @transform_4(%arg0: i32) -> (i32, i32, i32) {
    %c0_i32 = arith.constant 0 : i32
    %c0_i32_0 = arith.constant 0 : i32
    %c0_i32_1 = arith.constant 0 : i32
    return %arg0, %c0_i32, %c0_i32_0 : i32, i32, i32
  }
}

module attributes {stable_mosaic.version = 11 : i64} {
  func.func @_matmul_kernel(%arg0: i32, %arg1: i32, %arg2: i32, %arg3: memref<128x32xbf16, #tpu.memory_space<vmem>>, %arg4: memref<32x32xbf16, #tpu.memory_space<vmem>>, %arg5: memref<1x32xf32, #tpu.memory_space<vmem>>, %arg6: memref<128x32xbf16, #tpu.memory_space<vmem>>, %arg7: memref<128x32xf32, #tpu.memory_space<vmem>>) attributes {dimension_semantics = [#tpu.dimension_semantics<parallel>, #tpu.dimension_semantics<parallel>, #tpu.dimension_semantics<arbitrary>], iteration_bounds = array<i64: 1, 1, 1>, scalar_prefetch = 0 : i64, scratch_operands = 1 : i64, tpu.core_type = #tpu.core_type<tc>, window_params = [{transform_indices = @transform_0, window_bounds = array<i64: 128, 32>}, {transform_indices = @transform_1, window_bounds = array<i64: 32, 32>}, {transform_indices = @transform_2, window_bounds = array<i64: 1, 32>}, {transform_indices = @transform_3, window_bounds = array<i64: 128, 32>}]} {
    %c0_i32 = arith.constant 0 : i32
    %0 = arith.cmpi eq, %arg2, %c0_i32 : i32
    %1 = arith.extui %0 : i1 to i32
    %c0_i32_0 = arith.constant 0 : i32
    %2 = arith.cmpi ne, %1, %c0_i32_0 : i32
    scf.if %2 {
      %cst_10 = arith.constant 0.000000e+00 : f32
      %12 = vector.broadcast %cst_10 : f32 to vector<128x32xf32>
      %c0_11 = arith.constant 0 : index
      %c0_12 = arith.constant 0 : index
      %13 = vector.load %arg7[%c0_11, %c0_12] : memref<128x32xf32, #tpu.memory_space<vmem>>, vector<128x32xf32>
      tpu.vector_store %arg7[%c0_11, %c0_12], %12 {strides = array<i32>} : memref<128x32xf32, #tpu.memory_space<vmem>>, vector<128x32xf32>,
    } else {
    }
    %c0 = arith.constant 0 : index
    %c0_1 = arith.constant 0 : index
    %3 = vector.load %arg7[%c0, %c0_1] : memref<128x32xf32, #tpu.memory_space<vmem>>, vector<128x32xf32>
    %c0_2 = arith.constant 0 : index
    %c0_3 = arith.constant 0 : index
    %4 = vector.load %arg3[%c0_2, %c0_3] : memref<128x32xbf16, #tpu.memory_space<vmem>>, vector<128x32xbf16>
    %c0_4 = arith.constant 0 : index
    %c0_5 = arith.constant 0 : index
    %5 = vector.load %arg4[%c0_4, %c0_5] : memref<32x32xbf16, #tpu.memory_space<vmem>>, vector<32x32xbf16>
    %cst = arith.constant dense<0.000000e+00> : vector<128x32xf32>
    %6 = tpu.matmul %4, %5, %cst {dimension_numbers = #tpu.dot_dimension_numbers<[1], [0], [0], [1], [0, 0, 1, 1], [], []>} : vector<128x32xbf16>, vector<32x32xbf16>, vector<128x32xf32> -> vector<128x32xf32>
    %7 = arith.addf %3, %6 : vector<128x32xf32>
    %c0_6 = arith.constant 0 : index
    %c0_7 = arith.constant 0 : index
    %8 = vector.load %arg7[%c0_6, %c0_7] : memref<128x32xf32, #tpu.memory_space<vmem>>, vector<128x32xf32>
    tpu.vector_store %arg7[%c0_6, %c0_7], %7 {strides = array<i32>} : memref<128x32xf32, #tpu.memory_space<vmem>>, vector<128x32xf32>,
    %c0_i32_8 = arith.constant 0 : i32
    %9 = arith.cmpi eq, %arg2, %c0_i32_8 : i32
    %10 = arith.extui %9 : i1 to i32
    %c0_i32_9 = arith.constant 0 : i32
    %11 = arith.cmpi ne, %10, %c0_i32_9 : i32
    scf.if %11 {
      %c0_10 = arith.constant 0 : index
      %c0_11 = arith.constant 0 : index
      %12 = vector.load %arg7[%c0_10, %c0_11] : memref<128x32xf32, #tpu.memory_space<vmem>>, vector<128x32xf32>
      %c0_12 = arith.constant 0 : index
      %c0_13 = arith.constant 0 : index
      %13 = vector.load %arg5[%c0_12, %c0_13] : memref<1x32xf32, #tpu.memory_space<vmem>>, vector<1x32xf32>
      %14 = vector.broadcast %13 : vector<1x32xf32> to vector<128x32xf32>
      %15 = arith.addf %12, %14 : vector<128x32xf32>
      %cst_14 = arith.constant 0.000000e+00 : f32
      %16 = vector.broadcast %cst_14 : f32 to vector<128x32xf32>
      %17 = arith.maximumf %15, %16 : vector<128x32xf32>
      %18 = arith.truncf %17 : vector<128x32xf32> to vector<128x32xbf16>
      %c0_15 = arith.constant 0 : index
      %c0_16 = arith.constant 0 : index
      %19 = vector.load %arg6[%c0_15, %c0_16] : memref<128x32xbf16, #tpu.memory_space<vmem>>, vector<128x32xbf16>
      tpu.vector_store %arg6[%c0_15, %c0_16], %18 {strides = array<i32>} : memref<128x32xbf16, #tpu.memory_space<vmem>>, vector<128x32xbf16>,
    } else {
    }
    return
  }
  func.func @transform_0(%arg0: i32, %arg1: i32, %arg2: i32) -> (i32, i32) {
    %c0_i32 = arith.constant 0 : i32
    return %arg0, %arg2 : i32, i32
  }
  func.func @transform_1(%arg0: i32, %arg1: i32, %arg2: i32) -> (i32, i32) {
    %c0_i32 = arith.constant 0 : i32
    return %arg2, %arg1 : i32, i32
  }
  func.func @transform_2(%arg0: i32, %arg1: i32, %arg2: i32) -> (i32, i32) {
    %c0_i32 = arith.constant 0 : i32
    %c0_i32_0 = arith.constant 0 : i32
    return %c0_i32, %arg1 : i32, i32
  }
  func.func @transform_3(%arg0: i32, %arg1: i32, %arg2: i32) -> (i32, i32) {
    %c0_i32 = arith.constant 0 : i32
    return %arg0, %arg1 : i32, i32
  }
}

module attributes {stable_mosaic.version = 11 : i64} {
  func.func @_attend_conv3_kernel(%arg0: i32, %arg1: i32, %arg2: i32, %arg3: memref<2x1x64x32xbf16, #tpu.memory_space<vmem>>, %arg4: memref<1x2x32xf32, #tpu.memory_space<vmem>>, %arg5: memref<32x64xbf16, #tpu.memory_space<vmem>>, %arg6: memref<1x64xf32, #tpu.memory_space<vmem>>, %arg7: memref<1x64x64xf32, #tpu.memory_space<vmem>>) attributes {dimension_semantics = [#tpu.dimension_semantics<parallel>, #tpu.dimension_semantics<parallel>, #tpu.dimension_semantics<parallel>], iteration_bounds = array<i64: 2, 1, 1>, scalar_prefetch = 0 : i64, scratch_operands = 0 : i64, tpu.core_type = #tpu.core_type<tc>, window_params = [{transform_indices = @transform_0, window_bounds = array<i64: 2, 1, 64, 32>}, {transform_indices = @transform_1, window_bounds = array<i64: 1, 2, 32>}, {transform_indices = @transform_2, window_bounds = array<i64: 32, 64>}, {transform_indices = @transform_3, window_bounds = array<i64: 1, 64>}, {transform_indices = @transform_4, window_bounds = array<i64: 1, 64, 64>}]} {
    %c0 = arith.constant 0 : index
    %c0_0 = arith.constant 0 : index
    %c0_1 = arith.constant 0 : index
    %0 = vector.load %arg4[%c0, %c0_0, %c0_1] : memref<1x2x32xf32, #tpu.memory_space<vmem>>, vector<1x2x32xf32>
    %1 = vector.shape_cast %0 : vector<1x2x32xf32> to vector<2x32xf32>
    %2 = vector.extract_strided_slice %1 {offsets = [0, 0], sizes = [1, 32], strides = [1, 1]} : vector<2x32xf32> to vector<1x32xf32>
    %c0_2 = arith.constant 0 : index
    %c0_3 = arith.constant 0 : index
    %c0_4 = arith.constant 0 : index
    %c0_5 = arith.constant 0 : index
    %3 = vector.load %arg3[%c0_2, %c0_3, %c0_4, %c0_5] : memref<2x1x64x32xbf16, #tpu.memory_space<vmem>>, vector<1x1x64x32xbf16>
    %4 = vector.shape_cast %3 : vector<1x1x64x32xbf16> to vector<64x32xbf16>
    %5 = arith.extf %4 : vector<64x32xbf16> to vector<64x32xf32>
    %6 = vector.broadcast %2 : vector<1x32xf32> to vector<64x32xf32>
    %7 = arith.mulf %6, %5 : vector<64x32xf32>
    %8 = vector.extract_strided_slice %1 {offsets = [1, 0], sizes = [1, 32], strides = [1, 1]} : vector<2x32xf32> to vector<1x32xf32>
    %c1 = arith.constant 1 : index
    %c0_6 = arith.constant 0 : index
    %c0_7 = arith.constant 0 : index
    %c0_8 = arith.constant 0 : index
    %9 = vector.load %arg3[%c1, %c0_6, %c0_7, %c0_8] : memref<2x1x64x32xbf16, #tpu.memory_space<vmem>>, vector<1x1x64x32xbf16>
    %10 = vector.shape_cast %9 : vector<1x1x64x32xbf16> to vector<64x32xbf16>
    %11 = arith.extf %10 : vector<64x32xbf16> to vector<64x32xf32>
    %12 = vector.broadcast %8 : vector<1x32xf32> to vector<64x32xf32>
    %13 = arith.mulf %12, %11 : vector<64x32xf32>
    %14 = arith.addf %7, %13 : vector<64x32xf32>
    %15 = arith.truncf %14 : vector<64x32xf32> to vector<64x32xbf16>
    %c0_9 = arith.constant 0 : index
    %c0_10 = arith.constant 0 : index
    %16 = vector.load %arg5[%c0_9, %c0_10] : memref<32x64xbf16, #tpu.memory_space<vmem>>, vector<32x64xbf16>
    %cst = arith.constant dense<0.000000e+00> : vector<64x64xf32>
    %17 = tpu.matmul %15, %16, %cst {dimension_numbers = #tpu.dot_dimension_numbers<[1], [0], [0], [1], [0, 0, 1, 1], [], []>} : vector<64x32xbf16>, vector<32x64xbf16>, vector<64x64xf32> -> vector<64x64xf32>
    %c0_11 = arith.constant 0 : index
    %c0_12 = arith.constant 0 : index
    %18 = vector.load %arg6[%c0_11, %c0_12] : memref<1x64xf32, #tpu.memory_space<vmem>>, vector<1x64xf32>
    %19 = vector.broadcast %18 : vector<1x64xf32> to vector<64x64xf32>
    %20 = arith.addf %17, %19 : vector<64x64xf32>
    %c0_13 = arith.constant 0 : index
    %c0_14 = arith.constant 0 : index
    %c0_15 = arith.constant 0 : index
    %21 = vector.load %arg7[%c0_13, %c0_14, %c0_15] : memref<1x64x64xf32, #tpu.memory_space<vmem>>, vector<1x64x64xf32>
    %22 = vector.shape_cast %21 : vector<1x64x64xf32> to vector<64x64xf32>
    %23 = vector.shape_cast %20 : vector<64x64xf32> to vector<1x64x64xf32>
    tpu.vector_store %arg7[%c0_13, %c0_14, %c0_15], %23 {strides = array<i32>} : memref<1x64x64xf32, #tpu.memory_space<vmem>>, vector<1x64x64xf32>,
    return
  }
  func.func @transform_0(%arg0: i32, %arg1: i32, %arg2: i32) -> (i32, i32, i32, i32) {
    %c0_i32 = arith.constant 0 : i32
    %c0_i32_0 = arith.constant 0 : i32
    %c0_i32_1 = arith.constant 0 : i32
    return %c0_i32, %arg0, %arg1, %c0_i32_0 : i32, i32, i32, i32
  }
  func.func @transform_1(%arg0: i32, %arg1: i32, %arg2: i32) -> (i32, i32, i32) {
    %c0_i32 = arith.constant 0 : i32
    %c0_i32_0 = arith.constant 0 : i32
    %c0_i32_1 = arith.constant 0 : i32
    return %arg0, %c0_i32, %c0_i32_0 : i32, i32, i32
  }
  func.func @transform_2(%arg0: i32, %arg1: i32, %arg2: i32) -> (i32, i32) {
    %c0_i32 = arith.constant 0 : i32
    %c0_i32_0 = arith.constant 0 : i32
    return %c0_i32, %arg2 : i32, i32
  }
  func.func @transform_3(%arg0: i32, %arg1: i32, %arg2: i32) -> (i32, i32) {
    %c0_i32 = arith.constant 0 : i32
    %c0_i32_0 = arith.constant 0 : i32
    return %c0_i32, %arg2 : i32, i32
  }
  func.func @transform_4(%arg0: i32, %arg1: i32, %arg2: i32) -> (i32, i32, i32) {
    %c0_i32 = arith.constant 0 : i32
    return %arg0, %arg1, %arg2 : i32, i32, i32
  }
}

</mosaic_0001>

<llo_original>
// kernel: sknet_bottleneck_forward.3
$region0: #{sknet_bottleneck_forward.3}
  #allocation0 [shape = 'u32[]', space=smem, size = 0x4, offset = 0x4, fixed_abs, tag = 'smem constant byte address 0x4 - core index']
  #allocation1 [shape = 'u32[144,128]{1,0:T(1,128)}', space=vmem, size = 0x12000, scoped, tag = 'internal scratch']
  #allocation2 [shape = 'f32[128,32]{1,0:T(8,128)}', space=vmem, size = 0x10000, scoped, tag = 'scratch operand']
  %s0 = inlined_call_operand.vmem [shape: bf16[128,32], index: 0, kind: input, shape index: {}]
  %s1 = inlined_call_operand.vmem [shape: bf16[32,32], index: 1, kind: input, shape index: {}]
  %s2 = inlined_call_operand.vmem [shape: f32[1,32], index: 2, kind: input, shape index: {}]
  %s3 = inlined_call_operand.vmem [shape: bf16[128,32], index: 3, kind: output, shape index: {}]
  %s4 = sld [smem:[#allocation0]]
  $region30: #{sknet_bottleneck_forward.3} parent=0
    _
  %s6 = ssub.s32 1, %s4
  %s7 = scalar_select 0, %s6, %s4
  // Predicated region
  $region2: #{sknet_bottleneck_forward.3} parent=0 // pred_check
    _
  $region3: #{sknet_bottleneck_forward.3} parent=0 // pred_check_branch
    %9 = sbr.rel (0) target = $region5
  $region4: #{sknet_bottleneck_forward.3} parent=0 // pred_region
    _
  $region5: #{sknet_bottleneck_forward.3} parent=0 // pred_fallthru
    _
  // Predicated region
  $region6: #{sknet_bottleneck_forward.3} parent=0 // pred_check
    _
  $region7: #{sknet_bottleneck_forward.3} parent=0 // pred_check_branch
    %11 = sbr.rel (0) target = $region9
  $region8: #{sknet_bottleneck_forward.3} parent=0 // pred_region
    _
  $region9: #{sknet_bottleneck_forward.3} parent=0 // pred_fallthru
    _
  // Predicated region
  $region10: #{sknet_bottleneck_forward.3} parent=0 // pred_check
    _
  $region11: #{sknet_bottleneck_forward.3} parent=0 // pred_check_branch
    %13 = sbr.rel (0) target = $region13
  $region12: #{sknet_bottleneck_forward.3} parent=0 // pred_region
    _
  $region13: #{sknet_bottleneck_forward.3} parent=0 // pred_fallthru
    _
  %p15 = scmp.eq.s32.totalorder 0, 0
  // Predicated region
  $region14: #{sknet_bottleneck_forward.3} parent=0 // pred_check
    %p16 = pneg %p15
  $region15: #{sknet_bottleneck_forward.3} parent=0 // pred_check_branch
    %18 = sbr.rel (%p16) target = $region17
  $region16: #{sknet_bottleneck_forward.3} parent=0 // pred_region
    %vm19 = vcmask 261120
    %20 = vst.msk [vmem:[#allocation2] sm:$0xff] %vm19, 0.0
    %21 = vst.msk [vmem:[#allocation2 + $0x8] sm:$0xff] %vm19, 0.0
    %22 = vst.msk [vmem:[#allocation2 + $0x10] sm:$0xff] %vm19, 0.0
    %23 = vst.msk [vmem:[#allocation2 + $0x18] sm:$0xff] %vm19, 0.0
    %24 = vst.msk [vmem:[#allocation2 + $0x20] sm:$0xff] %vm19, 0.0
    %25 = vst.msk [vmem:[#allocation2 + $0x28] sm:$0xff] %vm19, 0.0
    %26 = vst.msk [vmem:[#allocation2 + $0x30] sm:$0xff] %vm19, 0.0
    %27 = vst.msk [vmem:[#allocation2 + $0x38] sm:$0xff] %vm19, 0.0
    %28 = vst.msk [vmem:[#allocation2 + $0x40] sm:$0xff] %vm19, 0.0
    %29 = vst.msk [vmem:[#allocation2 + $0x48] sm:$0xff] %vm19, 0.0
    %30 = vst.msk [vmem:[#allocation2 + $0x50] sm:$0xff] %vm19, 0.0
    %31 = vst.msk [vmem:[#allocation2 + $0x58] sm:$0xff] %vm19, 0.0
    %32 = vst.msk [vmem:[#allocation2 + $0x60] sm:$0xff] %vm19, 0.0
    %33 = vst.msk [vmem:[#allocation2 + $0x68] sm:$0xff] %vm19, 0.0
    %34 = vst.msk [vmem:[#allocation2 + $0x70] sm:$0xff] %vm19, 0.0
    %35 = vst.msk [vmem:[#allocation2 + $0x78] sm:$0xff] %vm19, 0.0
  $region17: #{sknet_bottleneck_forward.3} parent=0 // pred_fallthru
    _
  %v36 = vld [vmem:[#allocation2] sm:$0xff]
  %v37 = vld [vmem:[#allocation2 + $0x8] sm:$0xff]
  %v38 = vld [vmem:[#allocation2 + $0x10] sm:$0xff]
  %v39 = vld [vmem:[#allocation2 + $0x18] sm:$0xff]
  %v40 = vld [vmem:[#allocation2 + $0x20] sm:$0xff]
  %v41 = vld [vmem:[#allocation2 + $0x28] sm:$0xff]
  %v42 = vld [vmem:[#allocation2 + $0x30] sm:$0xff]
  %v43 = vld [vmem:[#allocation2 + $0x38] sm:$0xff]
  %v44 = vld [vmem:[#allocation2 + $0x40] sm:$0xff]
  %v45 = vld [vmem:[#allocation2 + $0x48] sm:$0xff]
  %v46 = vld [vmem:[#allocation2 + $0x50] sm:$0xff]
  %v47 = vld [vmem:[#allocation2 + $0x58] sm:$0xff]
  %v48 = vld [vmem:[#allocation2 + $0x60] sm:$0xff]
  %v49 = vld [vmem:[#allocation2 + $0x68] sm:$0xff]
  %v50 = vld [vmem:[#allocation2 + $0x70] sm:$0xff]
  %v51 = vld [vmem:[#allocation2 + $0x78] sm:$0xff]
  %v52 = vld [vmem:[%s0] sm:$0xf]
  %v53 = vld [vmem:[%s0 + $0x4] sm:$0xf]
  %v54 = vld [vmem:[%s0 + $0x8] sm:$0xf]
  %v55 = vld [vmem:[%s0 + $0xc] sm:$0xf]
  %v56 = vld [vmem:[%s0 + $0x10] sm:$0xf]
  %v57 = vld [vmem:[%s0 + $0x14] sm:$0xf]
  %v58 = vld [vmem:[%s0 + $0x18] sm:$0xf]
  %v59 = vld [vmem:[%s0 + $0x1c] sm:$0xf]
  %v60 = vld [vmem:[%s0 + $0x20] sm:$0xf]
  %v61 = vld [vmem:[%s0 + $0x24] sm:$0xf]
  %v62 = vld [vmem:[%s0 + $0x28] sm:$0xf]
  %v63 = vld [vmem:[%s0 + $0x2c] sm:$0xf]
  %v64 = vld [vmem:[%s0 + $0x30] sm:$0xf]
  %v65 = vld [vmem:[%s0 + $0x34] sm:$0xf]
  %v66 = vld [vmem:[%s0 + $0x38] sm:$0xf]
  %v67 = vld [vmem:[%s0 + $0x3c] sm:$0xf]
  %v68 = vld [vmem:[%s1] sm:$0xf]
  %v69 = vld [vmem:[%s1 + $0x4] sm:$0xf]
  %v70 = vld [vmem:[%s1 + $0x8] sm:$0xf]
  %v71 = vld [vmem:[%s1 + $0xc] sm:$0xf]
  %v88 = vunpack.c.l.b16 %v52
  %v89 = vunpack.c.l.b16 %v53
  %v90 = vunpack.c.l.b16 %v54
  %v91 = vunpack.c.l.b16 %v55
  %v92 = vunpack.c.l.b16 %v56
  %v93 = vunpack.c.l.b16 %v57
  %v94 = vunpack.c.l.b16 %v58
  %v95 = vunpack.c.l.b16 %v59
  %v96 = vunpack.c.l.b16 %v60
  %v97 = vunpack.c.l.b16 %v61
  %v98 = vunpack.c.l.b16 %v62
  %v99 = vunpack.c.l.b16 %v63
  %v100 = vunpack.c.l.b16 %v64
  %v101 = vunpack.c.l.b16 %v65
  %v102 = vunpack.c.l.b16 %v66
  %v103 = vunpack.c.l.b16 %v67
  %v104 = vpack.c.b16 %v89, %v88
  %v105 = vpack.c.b16 %v91, %v90
  %v106 = vpack.c.b16 %v93, %v92
  %v107 = vpack.c.b16 %v95, %v94
  %v108 = vpack.c.b16 %v97, %v96
  %v109 = vpack.c.b16 %v99, %v98
  %v110 = vpack.c.b16 %v101, %v100
  %v111 = vpack.c.b16 %v103, %v102
  %v116 = vunpack.c.l.b16 %v68
  %v117 = vunpack.c.l.b16 %v69
  %v118 = vunpack.c.l.b16 %v70
  %v119 = vunpack.c.l.b16 %v71
  %v120 = vpack.c.b16 %v117, %v116
  %v121 = vpack.c.b16 %v119, %v118
  %vm124 = vcmask 261120
  %v126 = vsel %vm124, %v104, 0
  %v129 = vsel %vm124, %v105, 0
  %v132 = vsel %vm124, %v106, 0
  %v135 = vsel %vm124, %v107, 0
  %v138 = vsel %vm124, %v108, 0
  %v141 = vsel %vm124, %v109, 0
  %v144 = vsel %vm124, %v110, 0
  %v147 = vsel %vm124, %v111, 0
  %149 = vmatprep.subr.bf16.mxu0 0
  %150 = vmatpush1.bf16.msra.mxu0 %v120
  %151 = vmatprep.subr.bf16.mxu0 0
  %152 = vmatpush1.bf16.msra.mxu0 %v121
  %153 = vmatprep.subr.bf16.mxu0 0
  %154 = vmatpush1.bf16.msra.mxu0 0
  %155 = vmatprep.subr.bf16.mxu0 0
  %156 = vmatpush1.bf16.msra.mxu0 0
  %157 = vmatprep.subr.bf16.mxu0 0
  %158 = vmatpush1.bf16.msra.mxu0 0
  %159 = vmatprep.subr.bf16.mxu0 0
  %160 = vmatpush1.bf16.msra.mxu0 0
  %161 = vmatprep.subr.bf16.mxu0 0
  %162 = vmatpush1.bf16.msra.mxu0 0
  %163 = vmatprep.subr.bf16.mxu0 0
  %164 = vmatpush1.bf16.msra.mxu0 0
  %165 = vmatprep.subr.bf16.mxu0 0
  %166 = vmatpush1.bf16.msra.mxu0 0
  %167 = vmatprep.subr.bf16.mxu0 0
  %168 = vmatpush1.bf16.msra.mxu0 0
  %169 = vmatprep.subr.bf16.mxu0 0
  %170 = vmatpush1.bf16.msra.mxu0 0
  %171 = vmatprep.subr.bf16.mxu0 0
  %172 = vmatpush1.bf16.msra.mxu0 0
  %173 = vmatprep.subr.bf16.mxu0 0
  %174 = vmatpush1.bf16.msra.mxu0 0
  %175 = vmatprep.subr.bf16.mxu0 0
  %176 = vmatpush1.bf16.msra.mxu0 0
  %177 = vmatprep.subr.bf16.mxu0 0
  %178 = vmatpush1.bf16.msra.mxu0 0
  %179 = vmatprep.subr.bf16.mxu0 0
  %180 = vmatpush1.bf16.msra.mxu0 0
  %181 = vmatprep.mubr.bf16.mxu0 0
  %182 = vmatmul.mubr.bf16.gmra.mrb[0].mxu0 %v126
  %v183 = vpop.f32.mrb[0].mxu0
  %v184 = vadd.f32 0.0, %v183
  %v185 = vpop.f32.mrb[0].mxu0
  %v186 = vpop.f32.mrb[0].mxu0
  %v187 = vadd.f32 0.0, %v186
  %v188 = vpop.f32.mrb[0].mxu0
  %189 = vmatprep.mubr.bf16.mxu0 0
  %190 = vmatmul.mubr.bf16.gmra.mrb[0].mxu0 %v129
  %v191 = vpop.f32.mrb[0].mxu0
  %v192 = vadd.f32 0.0, %v191
  %v193 = vpop.f32.mrb[0].mxu0
  %v194 = vpop.f32.mrb[0].mxu0
  %v195 = vadd.f32 0.0, %v194
  %v196 = vpop.f32.mrb[0].mxu0
  %197 = vmatprep.mubr.bf16.mxu0 0
  %198 = vmatmul.mubr.bf16.gmra.mrb[0].mxu0 %v132
  %v199 = vpop.f32.mrb[0].mxu0
  %v200 = vadd.f32 0.0, %v199
  %v201 = vpop.f32.mrb[0].mxu0
  %v202 = vpop.f32.mrb[0].mxu0
  %v203 = vadd.f32 0.0, %v202
  %v204 = vpop.f32.mrb[0].mxu0
  %205 = vmatprep.mubr.bf16.mxu0 0
  %206 = vmatmul.mubr.bf16.gmra.mrb[0].mxu0 %v135
  %v207 = vpop.f32.mrb[0].mxu0
  %v208 = vadd.f32 0.0, %v207
  %v209 = vpop.f32.mrb[0].mxu0
  %v210 = vpop.f32.mrb[0].mxu0
  %v211 = vadd.f32 0.0, %v210
  %v212 = vpop.f32.mrb[0].mxu0
  %213 = vmatprep.mubr.bf16.mxu0 0
  %214 = vmatmul.mubr.bf16.gmra.mrb[0].mxu0 %v138
  %v215 = vpop.f32.mrb[0].mxu0
  %v216 = vadd.f32 0.0, %v215
  %v217 = vpop.f32.mrb[0].mxu0
  %v218 = vpop.f32.mrb[0].mxu0
  %v219 = vadd.f32 0.0, %v218
  %v220 = vpop.f32.mrb[0].mxu0
  %221 = vmatprep.mubr.bf16.mxu0 0
  %222 = vmatmul.mubr.bf16.gmra.mrb[0].mxu0 %v141
  %v223 = vpop.f32.mrb[0].mxu0
  %v224 = vadd.f32 0.0, %v223
  %v225 = vpop.f32.mrb[0].mxu0
  %v226 = vpop.f32.mrb[0].mxu0
  %v227 = vadd.f32 0.0, %v226
  %v228 = vpop.f32.mrb[0].mxu0
  %229 = vmatprep.mubr.bf16.mxu0 0
  %230 = vmatmul.mubr.bf16.gmra.mrb[0].mxu0 %v144
  %v231 = vpop.f32.mrb[0].mxu0
  %v232 = vadd.f32 0.0, %v231
  %v233 = vpop.f32.mrb[0].mxu0
  %v234 = vpop.f32.mrb[0].mxu0
  %v235 = vadd.f32 0.0, %v234
  %v236 = vpop.f32.mrb[0].mxu0
  %237 = vmatprep.mubr.bf16.mxu0 0
  %238 = vmatmul.mubr.bf16.gmra.mrb[0].mxu0 %v147
  %v239 = vpop.f32.mrb[0].mxu0
  %v240 = vadd.f32 0.0, %v239
  %v241 = vpop.f32.mrb[0].mxu0
  %v242 = vpop.f32.mrb[0].mxu0
  %v243 = vadd.f32 0.0, %v242
  %v244 = vpop.f32.mrb[0].mxu0
  %245 = vdwg.mxu0
  %v246 = vadd.f32 %v36, %v184
  %v247 = vadd.f32 %v37, %v187
  %v248 = vadd.f32 %v38, %v192
  %v249 = vadd.f32 %v39, %v195
  %v250 = vadd.f32 %v40, %v200
  %v251 = vadd.f32 %v41, %v203
  %v252 = vadd.f32 %v42, %v208
  %v253 = vadd.f32 %v43, %v211
  %v254 = vadd.f32 %v44, %v216
  %v255 = vadd.f32 %v45, %v219
  %v256 = vadd.f32 %v46, %v224
  %v257 = vadd.f32 %v47, %v227
  %v258 = vadd.f32 %v48, %v232
  %v259 = vadd.f32 %v49, %v235
  %v260 = vadd.f32 %v50, %v240
  %v261 = vadd.f32 %v51, %v243
  %262 = vst.msk [vmem:[#allocation2] sm:$0xff] %vm124, %v246
  %263 = vst.msk [vmem:[#allocation2 + $0x8] sm:$0xff] %vm124, %v247
  %264 = vst.msk [vmem:[#allocation2 + $0x10] sm:$0xff] %vm124, %v248
  %265 = vst.msk [vmem:[#allocation2 + $0x18] sm:$0xff] %vm124, %v249
  %266 = vst.msk [vmem:[#allocation2 + $0x20] sm:$0xff] %vm124, %v250
  %267 = vst.msk [vmem:[#allocation2 + $0x28] sm:$0xff] %vm124, %v251
  %268 = vst.msk [vmem:[#allocation2 + $0x30] sm:$0xff] %vm124, %v252
  %269 = vst.msk [vmem:[#allocation2 + $0x38] sm:$0xff] %vm124, %v253
  %270 = vst.msk [vmem:[#allocation2 + $0x40] sm:$0xff] %vm124, %v254
  %271 = vst.msk [vmem:[#allocation2 + $0x48] sm:$0xff] %vm124, %v255
  %272 = vst.msk [vmem:[#allocation2 + $0x50] sm:$0xff] %vm124, %v256
  %273 = vst.msk [vmem:[#allocation2 + $0x58] sm:$0xff] %vm124, %v257
  %274 = vst.msk [vmem:[#allocation2 + $0x60] sm:$0xff] %vm124, %v258
  %275 = vst.msk [vmem:[#allocation2 + $0x68] sm:$0xff] %vm124, %v259
  %276 = vst.msk [vmem:[#allocation2 + $0x70] sm:$0xff] %vm124, %v260
  %277 = vst.msk [vmem:[#allocation2 + $0x78] sm:$0xff] %vm124, %v261
  // Predicated region
  $region18: #{sknet_bottleneck_forward.3} parent=0 // pred_check
    %p278 = pneg %p15
  $region19: #{sknet_bottleneck_forward.3} parent=0 // pred_check_branch
    %280 = sbr.rel (%p278) target = $region21
  $region20: #{sknet_bottleneck_forward.3} parent=0 // pred_region
    %v281 = vld [vmem:[#allocation2] sm:$0xff]
    %v282 = vld [vmem:[#allocation2 + $0x8] sm:$0xff]
    %v283 = vld [vmem:[#allocation2 + $0x10] sm:$0xff]
    %v284 = vld [vmem:[#allocation2 + $0x18] sm:$0xff]
    %v285 = vld [vmem:[#allocation2 + $0x20] sm:$0xff]
    %v286 = vld [vmem:[#allocation2 + $0x28] sm:$0xff]
    %v287 = vld [vmem:[#allocation2 + $0x30] sm:$0xff]
    %v288 = vld [vmem:[#allocation2 + $0x38] sm:$0xff]
    %v289 = vld [vmem:[#allocation2 + $0x40] sm:$0xff]
    %v290 = vld [vmem:[#allocation2 + $0x48] sm:$0xff]
    %v291 = vld [vmem:[#allocation2 + $0x50] sm:$0xff]
    %v292 = vld [vmem:[#allocation2 + $0x58] sm:$0xff]
    %v293 = vld [vmem:[#allocation2 + $0x60] sm:$0xff]
    %v294 = vld [vmem:[#allocation2 + $0x68] sm:$0xff]
    %v295 = vld [vmem:[#allocation2 + $0x70] sm:$0xff]
    %v296 = vld [vmem:[#allocation2 + $0x78] sm:$0xff]
    %v297 = vld [vmem:[%s2] sm:$0x1]
    %v299 = vlaneseq
    %v300 = vshrl.u32 %v299, 7
    %v301 = vsub.s32 0, %v300
    %v302 = vrot.slane %v297, %v301
    %v304 = vadd.f32 %v281, %v302
    %v305 = vadd.f32 %v282, %v302
    %v306 = vadd.f32 %v283, %v302
    %v307 = vadd.f32 %v284, %v302
    %v308 = vadd.f32 %v285, %v302
    %v309 = vadd.f32 %v286, %v302
    %v310 = vadd.f32 %v287, %v302
    %v311 = vadd.f32 %v288, %v302
    %v312 = vadd.f32 %v289, %v302
    %v313 = vadd.f32 %v290, %v302
    %v314 = vadd.f32 %v291, %v302
    %v315 = vadd.f32 %v292, %v302
    %v316 = vadd.f32 %v293, %v302
    %v317 = vadd.f32 %v294, %v302
    %v318 = vadd.f32 %v295, %v302
    %v319 = vadd.f32 %v296, %v302
    %v320 = vmax.f32 %v304, 0.0
    %v321 = vmax.f32 %v305, 0.0
    %v322 = vmax.f32 %v306, 0.0
    %v323 = vmax.f32 %v307, 0.0
    %v324 = vmax.f32 %v308, 0.0
    %v325 = vmax.f32 %v309, 0.0
    %v326 = vmax.f32 %v310, 0.0
    %v327 = vmax.f32 %v311, 0.0
    %v328 = vmax.f32 %v312, 0.0
    %v329 = vmax.f32 %v313, 0.0
    %v330 = vmax.f32 %v314, 0.0
    %v331 = vmax.f32 %v315, 0.0
    %v332 = vmax.f32 %v316, 0.0
    %v333 = vmax.f32 %v317, 0.0
    %v334 = vmax.f32 %v318, 0.0
    %v335 = vmax.f32 %v319, 0.0
    %v336 = vpack.c.bf16 %v321, %v320
    %v337 = vpack.c.bf16 %v323, %v322
    %v338 = vpack.c.bf16 %v325, %v324
    %v339 = vpack.c.bf16 %v327, %v326
    %v340 = vpack.c.bf16 %v329, %v328
    %v341 = vpack.c.bf16 %v331, %v330
    %v342 = vpack.c.bf16 %v333, %v332
    %v343 = vpack.c.bf16 %v335, %v334
    %v352 = vunpack.c.l.b16 %v336
    %v353 = vunpack.c.h.b16 %v336
    %v354 = vunpack.c.l.b16 %v337
    %v355 = vunpack.c.h.b16 %v337
    %v356 = vunpack.c.l.b16 %v338
    %v357 = vunpack.c.h.b16 %v338
    %v358 = vunpack.c.l.b16 %v339
    %v359 = vunpack.c.h.b16 %v339
    %v360 = vunpack.c.l.b16 %v340
    %v361 = vunpack.c.h.b16 %v340
    %v362 = vunpack.c.l.b16 %v341
    %v363 = vunpack.c.h.b16 %v341
    %v364 = vunpack.c.l.b16 %v342
    %v365 = vunpack.c.h.b16 %v342
    %v366 = vunpack.c.l.b16 %v343
    %v367 = vunpack.c.h.b16 %v343
    %v368 = vpack.c.b16 %v352, %v352
    %v369 = vpack.c.b16 %v353, %v353
    %v370 = vpack.c.b16 %v354, %v354
    %v371 = vpack.c.b16 %v355, %v355
    %v372 = vpack.c.b16 %v356, %v356
    %v373 = vpack.c.b16 %v357, %v357
    %v374 = vpack.c.b16 %v358, %v358
    %v375 = vpack.c.b16 %v359, %v359
    %v376 = vpack.c.b16 %v360, %v360
    %v377 = vpack.c.b16 %v361, %v361
    %v378 = vpack.c.b16 %v362, %v362
    %v379 = vpack.c.b16 %v363, %v363
    %v380 = vpack.c.b16 %v364, %v364
    %v381 = vpack.c.b16 %v365, %v365
    %v382 = vpack.c.b16 %v366, %v366
    %v383 = vpack.c.b16 %v367, %v367
    %vm400 = vcmask 257024
    %401 = vst.msk [vmem:[%s3] sm:$0xf] %vm400, %v368
    %402 = vst.msk [vmem:[%s3 + $0x4] sm:$0xf] %vm400, %v369
    %403 = vst.msk [vmem:[%s3 + $0x8] sm:$0xf] %vm400, %v370
    %404 = vst.msk [vmem:[%s3 + $0xc] sm:$0xf] %vm400, %v371
    %405 = vst.msk [vmem:[%s3 + $0x10] sm:$0xf] %vm400, %v372
    %406 = vst.msk [vmem:[%s3 + $0x14] sm:$0xf] %vm400, %v373
    %407 = vst.msk [vmem:[%s3 + $0x18] sm:$0xf] %vm400, %v374
    %408 = vst.msk [vmem:[%s3 + $0x1c] sm:$0xf] %vm400, %v375
    %409 = vst.msk [vmem:[%s3 + $0x20] sm:$0xf] %vm400, %v376
    %410 = vst.msk [vmem:[%s3 + $0x24] sm:$0xf] %vm400, %v377
    %411 = vst.msk [vmem:[%s3 + $0x28] sm:$0xf] %vm400, %v378
    %412 = vst.msk [vmem:[%s3 + $0x2c] sm:$0xf] %vm400, %v379
    %413 = vst.msk [vmem:[%s3 + $0x30] sm:$0xf] %vm400, %v380
    %414 = vst.msk [vmem:[%s3 + $0x34] sm:$0xf] %vm400, %v381
    %415 = vst.msk [vmem:[%s3 + $0x38] sm:$0xf] %vm400, %v382
    %416 = vst.msk [vmem:[%s3 + $0x3c] sm:$0xf] %vm400, %v383
  $region21: #{sknet_bottleneck_forward.3} parent=0 // pred_fallthru
    _
  // Predicated region
  $region22: #{sknet_bottleneck_forward.3} parent=0 // pred_check
    _
  $region23: #{sknet_bottleneck_forward.3} parent=0 // pred_check_branch
    %418 = sbr.rel (0) target = $region25
  $region24: #{sknet_bottleneck_forward.3} parent=0 // pred_region
    _
  $region25: #{sknet_bottleneck_forward.3} parent=0 // pred_fallthru
    _
  // Predicated region
  $region26: #{sknet_bottleneck_forward.3} parent=0 // pred_check
    _
  $region27: #{sknet_bottleneck_forward.3} parent=0 // pred_check_branch
    %420 = sbr.rel (0) target = $region29
  $region28: #{sknet_bottleneck_forward.3} parent=0 // pred_region
    _
  $region29: #{sknet_bottleneck_forward.3} parent=0 // pred_fallthru
    _

// kernel: sknet_bottleneck_forward.4
$region0: #{sknet_bottleneck_forward.4}
  #allocation0 [shape = 'u32[]', space=smem, size = 0x4, offset = 0x4, fixed_abs, tag = 'smem constant byte address 0x4 - core index']
  #allocation1 [shape = 'u32[144,128]{1,0:T(1,128)}', space=vmem, size = 0x12000, scoped, tag = 'internal scratch']
  #allocation2 [shape = 'f32[12,12,32]{2,1,0:T(8,128)}', space=vmem, size = 0x18000, scoped, tag = 'scratch operand']
  %s0 = inlined_call_operand.vmem [shape: bf16[2,8,8,32], index: 0, kind: input, shape index: {}]
  %s1 = inlined_call_operand.vmem [shape: f32[2,9,32], index: 1, kind: input, shape index: {}]
  %s2 = inlined_call_operand.vmem [shape: f32[2,32], index: 2, kind: input, shape index: {}]
  %s3 = inlined_call_operand.vmem [shape: bf16[2,2,8,8,32], index: 3, kind: output, shape index: {0}]
  %s4 = inlined_call_operand.vmem [shape: f32[2,1,32], index: 4, kind: output, shape index: {1}]
  %5 = xla_tuple %s3, %s4
  %s6 = sld [smem:[#allocation0]]
  $region90: #{sknet_bottleneck_forward.4} parent=0
    _
  %s8 = ssub.s32 1, %s6
  %s9 = scalar_select 0, %s8, %s6
  $region1: #{sknet_bottleneck_forward.4} parent=0
    #allocation3 [shape = 'u8[65536]{0}', space=vmem, size = 0x10000, scoped, tag = 'output window, operand 0']
    loop: start=0, step=1, limit=4
    $region2: #{sknet_bottleneck_forward.4} parent=1 // loop_pre_header
      _
    $region3: #{sknet_bottleneck_forward.4} parent=1 // loop_header
      %s11 = sphi 0, %s15
      %p12 = scmp.ge.s32.totalorder %s11, 4
      %s21 = sphi 0, %s23
      %s24 = sphi 0, %s21
      %s25 = sphi 0, %s24
      %s41 = sphi 0, %s25
      %s45 = sphi 0, %s45
      %s47 = sphi 0, %s45
      %s48 = sphi 0, %s47
      %s62 = sphi 0, %s48
      %s66 = sphi 0, %s66
      %s68 = sphi 0, %s66
      %s69 = sphi 0, %s68
      %s83 = sphi 0, %s69
      %s89 = sphi 0, %s91
      %s92 = sphi 0, %s89
      %s93 = sphi 0, %s92
      %s109 = sphi 0, %s93
      %s115 = sphi 0, %s117
      %s118 = sphi 0, %s115
      %s119 = sphi 0, %s118
      %s135 = sphi 0, %s119
    $region4: #{sknet_bottleneck_forward.4} parent=1 // loop_header_branch
      %14 = sbr.rel (%p12) target = $region8
    $region5: #{sknet_bottleneck_forward.4} parent=1 // loop_body
      %s16 = ssub.s32 %s11, 1
      %s17 = ssub.s32 %s11, 2
      %s18 = sadd.s32 %s11, 1
      %s19 = ssub.s32 %s11, %s18
      %p20 = scmp.eq.s32.totalorder %s19, 0
      %s22 = sadd.s32 %s21, 1
      %s23 = scalar_select %p20, %s21, %s22
      %p26 = pneg %p20
      %p27 = scmp.eq.s32.totalorder %s11, 1
      %p28 = por %p26, %p27
      %p29 = scmp.ne.s32.totalorder %s21, %s24
      %p30 = scmp.eq.s32.totalorder %s11, 0
      %p31 = por %p29, %p30
      %p32 = scmp.ne.s32.totalorder %s21, %s24
      %p33 = scmp.eq.s32.totalorder %s16, 1
      %p34 = por %p32, %p33
      %p35 = scmp.ne.s32.totalorder %s24, %s25
      %p36 = scmp.eq.s32.totalorder %s16, 0
      %p37 = por %p35, %p36
      %p38 = scmp.ne.s32.totalorder %s24, %s25
      %p39 = scmp.eq.s32.totalorder %s17, 1
      %p40 = por %p38, %p39
      %p42 = scmp.ne.s32.totalorder %s25, %s41
      %p43 = scmp.eq.s32.totalorder %s17, 0
      %p44 = por %p42, %p43
      %s46 = sadd.s32 %s45, 1
      %p49 = scmp.eq.s32.totalorder %s11, 1
      %p50 = scmp.ne.s32.totalorder %s45, %s47
      %p51 = scmp.eq.s32.totalorder %s11, 0
      %p52 = por %p50, %p51
      %p53 = scmp.ne.s32.totalorder %s45, %s47
      %p54 = scmp.eq.s32.totalorder %s16, 1
      %p55 = por %p53, %p54
      %p56 = scmp.ne.s32.totalorder %s47, %s48
      %p57 = scmp.eq.s32.totalorder %s16, 0
      %p58 = por %p56, %p57
      %p59 = scmp.ne.s32.totalorder %s47, %s48
      %p60 = scmp.eq.s32.totalorder %s17, 1
      %p61 = por %p59, %p60
      %p63 = scmp.ne.s32.totalorder %s48, %s62
      %p64 = scmp.eq.s32.totalorder %s17, 0
      %p65 = por %p63, %p64
      %s67 = sadd.s32 %s66, 1
      %p70 = scmp.eq.s32.totalorder %s11, 1
      %p71 = scmp.ne.s32.totalorder %s66, %s68
      %p72 = scmp.eq.s32.totalorder %s11, 0
      %p73 = por %p71, %p72
      %p74 = scmp.ne.s32.totalorder %s66, %s68
      %p75 = scmp.eq.s32.totalorder %s16, 1
      %p76 = por %p74, %p75
      %p77 = scmp.ne.s32.totalorder %s68, %s69
      %p78 = scmp.eq.s32.totalorder %s16, 0
      %p79 = por %p77, %p78
      %p80 = scmp.ne.s32.totalorder %s68, %s69
      %p81 = scmp.eq.s32.totalorder %s17, 1
      %p82 = por %p80, %p81
      %p84 = scmp.ne.s32.totalorder %s69, %s83
      %p85 = scmp.eq.s32.totalorder %s17, 0
      %p86 = por %p84, %p85
      %s87 = ssub.s32 %s11, %s18
      %p88 = scmp.eq.s32.totalorder %s87, 0
      %s90 = sadd.s32 %s89, 1
      %s91 = scalar_select %p88, %s89, %s90
      %p94 = pneg %p88
      %p95 = scmp.eq.s32.totalorder %s11, 1
      %p96 = por %p94, %p95
      %p97 = scmp.ne.s32.totalorder %s89, %s92
      %p98 = scmp.eq.s32.totalorder %s11, 0
      %p99 = por %p97, %p98
      %p100 = scmp.ne.s32.totalorder %s89, %s92
      %p101 = scmp.eq.s32.totalorder %s16, 1
      %p102 = por %p100, %p101
      %p103 = scmp.ne.s32.totalorder %s92, %s93
      %p104 = scmp.eq.s32.totalorder %s16, 0
      %p105 = por %p103, %p104
      %p106 = scmp.ne.s32.totalorder %s92, %s93
      %p107 = scmp.eq.s32.totalorder %s17, 1
      %p108 = por %p106, %p107
      %p110 = scmp.ne.s32.totalorder %s93, %s109
      %p111 = scmp.eq.s32.totalorder %s17, 0
      %p112 = por %p110, %p111
      %s113 = ssub.s32 %s11, %s18
      %p114 = scmp.eq.s32.totalorder %s113, 0
      %s116 = sadd.s32 %s115, 1
      %s117 = scalar_select %p114, %s115, %s116
      %p120 = pneg %p114
      %p121 = scmp.eq.s32.totalorder %s11, 1
      %p122 = por %p120, %p121
      %p123 = scmp.ne.s32.totalorder %s115, %s118
      %p124 = scmp.eq.s32.totalorder %s11, 0
      %p125 = por %p123, %p124
      %p126 = scmp.ne.s32.totalorder %s115, %s118
      %p127 = scmp.eq.s32.totalorder %s16, 1
      %p128 = por %p126, %p127
      %p129 = scmp.ne.s32.totalorder %s118, %s119
      %p130 = scmp.eq.s32.totalorder %s16, 0
      %p131 = por %p129, %p130
      %p132 = scmp.ne.s32.totalorder %s118, %s119
      %p133 = scmp.eq.s32.totalorder %s17, 1
      %p134 = por %p132, %p133
      %p136 = scmp.ne.s32.totalorder %s119, %s135
      %p137 = scmp.eq.s32.totalorder %s17, 0
      %p138 = por %p136, %p137
      %p139 = scmp.le.s32.totalorder 1, %s11
      %p140 = scmp.lt.s32.totalorder %s11, 3
      %p141 = pnand %p139, %p140
      %p142 = pneg %p141
      // Predicated region
      $region9: #{sknet_bottleneck_forward.4} parent=5 // pred_check
        _
      $region10: #{sknet_bottleneck_forward.4} parent=5 // pred_check_branch
        %144 = sbr.rel (%p141) target = $region12
      $region11: #{sknet_bottleneck_forward.4} parent=5 // pred_region
        %s145 = ssub.s32 %s11, 1
        // Predicated region
        $region13: #{sknet_bottleneck_forward.4} parent=11 // pred_check
          %p146 = pneg %p58
        $region14: #{sknet_bottleneck_forward.4} parent=11 // pred_check_branch
          %148 = sbr.rel (%p146) target = $region16
        $region15: #{sknet_bottleneck_forward.4} parent=11 // pred_region
          _
        $region16: #{sknet_bottleneck_forward.4} parent=11 // pred_fallthru
          _
        // Predicated region
        $region17: #{sknet_bottleneck_forward.4} parent=11 // pred_check
          %p149 = pneg %p79
        $region18: #{sknet_bottleneck_forward.4} parent=11 // pred_check_branch
          %151 = sbr.rel (%p149) target = $region20
        $region19: #{sknet_bottleneck_forward.4} parent=11 // pred_region
          _
        $region20: #{sknet_bottleneck_forward.4} parent=11 // pred_fallthru
          _
      $region12: #{sknet_bottleneck_forward.4} parent=5 // pred_fallthru
        _
      %p152 = scmp.lt.s32.totalorder %s11, 2
      // Predicated region
      $region21: #{sknet_bottleneck_forward.4} parent=5 // pred_check
        %p153 = pneg %p152
      $region22: #{sknet_bottleneck_forward.4} parent=5 // pred_check_branch
        %155 = sbr.rel (%p153) target = $region24
      $region23: #{sknet_bottleneck_forward.4} parent=5 // pred_region
        // Predicated region
        $region25: #{sknet_bottleneck_forward.4} parent=23 // pred_check
          %p156 = pneg %p31
        $region26: #{sknet_bottleneck_forward.4} parent=23 // pred_check_branch
          %158 = sbr.rel (%p156) target = $region28
        $region27: #{sknet_bottleneck_forward.4} parent=23 // pred_region
          %p159 = scmp.lt.s32.totalorder %s11, 1
          %s160 = scalar_select %p159, %s11, 1
          %s161 = smul.addr %s160, 8
          %s162 = smul.addr %s161, 4
          %s163 = scalar_lea.vmem %s0, %s162
        $region28: #{sknet_bottleneck_forward.4} parent=23 // pred_fallthru
          _
      $region24: #{sknet_bottleneck_forward.4} parent=5 // pred_fallthru
        _
      %p164 = scmp.le.s32.totalorder 1, %s11
      %p165 = scmp.lt.s32.totalorder %s11, 3
      %p166 = pnand %p164, %p165
      %p167 = pneg %p166
      // Predicated region
      $region29: #{sknet_bottleneck_forward.4} parent=5 // pred_check
        _
      $region30: #{sknet_bottleneck_forward.4} parent=5 // pred_check_branch
        %169 = sbr.rel (%p166) target = $region32
      $region31: #{sknet_bottleneck_forward.4} parent=5 // pred_region
        %s170 = ssub.s32 %s11, 1
        %p171 = scmp.lt.s32.totalorder %s16, 1
        %s172 = scalar_select %p171, %s16, 1
        %s173 = smul.addr %s172, 8
        %s174 = smul.addr %s173, 4
        %s175 = scalar_lea.vmem %s0, %s174
        %p176 = pneg %p37
        %p177 = pneg %p34
        %p178 = pneg %p58
        %p179 = pneg %p55
        %p180 = pneg %p79
        %p181 = pneg %p76
        %p182 = pneg %p105
        %p183 = pneg %p102
        %s184 = sand.u32 %s92, 1
        %s185 = sand.u32 %s92, 1
        %s186 = smul.addr %s185, 64
        %s187 = scalar_lea.vmem [#allocation3], %s186
        %p188 = pneg %p131
        %p189 = pneg %p128
        %p190 = scmp.lt.s32.totalorder %s16, 1
        %s191 = scalar_select %p190, %s16, 1
        %s192 = scalar_lea.vmem %s4, %s191
        %p193 = scmp.lt.s32.totalorder %s16, 1
        %s194 = scalar_select %p193, %s16, 1
        %s195 = smul.addr %s194, 8
        %s196 = smul.addr %s195, 4
        %s197 = scalar_lea.vmem %s0, %s196
        %p198 = scmp.lt.s32.totalorder %s16, 1
        %s199 = scalar_select %p198, %s16, 1
        %s200 = scalar_lea.vmem %s4, %s199
        %vm201 = vcmask 261120
        %202 = vst.msk [vmem:[#allocation2] sm:$0xff] %vm201, 0.0
        %vm203 = vcmask 257024
        %204 = vst.msk [vmem:[#allocation2 + $0x8] sm:$0xf] %vm203, 0.0
        %205 = vst.msk [vmem:[#allocation2 + $0x10] sm:$0xff] %vm201, 0.0
        %206 = vst.msk [vmem:[#allocation2 + $0x18] sm:$0xf] %vm203, 0.0
        %207 = vst.msk [vmem:[#allocation2 + $0x20] sm:$0xff] %vm201, 0.0
        %208 = vst.msk [vmem:[#allocation2 + $0x28] sm:$0xf] %vm203, 0.0
        %209 = vst.msk [vmem:[#allocation2 + $0x30] sm:$0xff] %vm201, 0.0
        %210 = vst.msk [vmem:[#allocation2 + $0x38] sm:$0xf] %vm203, 0.0
        %211 = vst.msk [vmem:[#allocation2 + $0x40] sm:$0xff] %vm201, 0.0
        %212 = vst.msk [vmem:[#allocation2 + $0x48] sm:$0xf] %vm203, 0.0
        %213 = vst.msk [vmem:[#allocation2 + $0x50] sm:$0xff] %vm201, 0.0
        %214 = vst.msk [vmem:[#allocation2 + $0x58] sm:$0xf] %vm203, 0.0
        %215 = vst.msk [vmem:[#allocation2 + $0x60] sm:$0xff] %vm201, 0.0
        %216 = vst.msk [vmem:[#allocation2 + $0x68] sm:$0xf] %vm203, 0.0
        %217 = vst.msk [vmem:[#allocation2 + $0x70] sm:$0xff] %vm201, 0.0
        %218 = vst.msk [vmem:[#allocation2 + $0x78] sm:$0xf] %vm203, 0.0
        %219 = vst.msk [vmem:[#allocation2 + $0x80] sm:$0xff] %vm201, 0.0
        %220 = vst.msk [vmem:[#allocation2 + $0x88] sm:$0xf] %vm203, 0.0
        %221 = vst.msk [vmem:[#allocation2 + $0x90] sm:$0xff] %vm201, 0.0
        %222 = vst.msk [vmem:[#allocation2 + $0x98] sm:$0xf] %vm203, 0.0
        %223 = vst.msk [vmem:[#allocation2 + $0xa0] sm:$0xff] %vm201, 0.0
        %224 = vst.msk [vmem:[#allocation2 + $0xa8] sm:$0xf] %vm203, 0.0
        %225 = vst.msk [vmem:[#allocation2 + $0xb0] sm:$0xff] %vm201, 0.0
        %226 = vst.msk [vmem:[#allocation2 + $0xb8] sm:$0xf] %vm203, 0.0
        %v227 = vld [vmem:[%s197] sm:$0xf]
        %v228 = vld [vmem:[%s197 + $0x4] sm:$0xf]
        %v229 = vld [vmem:[%s197 + $0x8] sm:$0xf]
        %v230 = vld [vmem:[%s197 + $0xc] sm:$0xf]
        %v231 = vld [vmem:[%s197 + $0x10] sm:$0xf]
        %v232 = vld [vmem:[%s197 + $0x14] sm:$0xf]
        %v233 = vld [vmem:[%s197 + $0x18] sm:$0xf]
        %v234 = vld [vmem:[%s197 + $0x1c] sm:$0xf]
        %v235 = vunpack.c.l.bf16 %v227
        %v236 = vunpack.c.l.bf16 %v228
        %v237 = vunpack.c.l.bf16 %v229
        %v238 = vunpack.c.l.bf16 %v230
        %v239 = vunpack.c.l.bf16 %v231
        %v240 = vunpack.c.l.bf16 %v232
        %v241 = vunpack.c.l.bf16 %v233
        %v242 = vunpack.c.l.bf16 %v234
        %s243 = scalar_lea.vmem [#allocation2], 32
        %244 = vst.msk [vmem:[%s243 + $0x2] sm:$0xff] %vm201, %v235
        %245 = vst.msk [vmem:[%s243 + $0x12] sm:$0xff] %vm201, %v236
        %246 = vst.msk [vmem:[%s243 + $0x22] sm:$0xff] %vm201, %v237
        %247 = vst.msk [vmem:[%s243 + $0x32] sm:$0xff] %vm201, %v238
        %248 = vst.msk [vmem:[%s243 + $0x42] sm:$0xff] %vm201, %v239
        %249 = vst.msk [vmem:[%s243 + $0x52] sm:$0xff] %vm201, %v240
        %250 = vst.msk [vmem:[%s243 + $0x62] sm:$0xff] %vm201, %v241
        %251 = vst.msk [vmem:[%s243 + $0x72] sm:$0xff] %vm201, %v242
        %v252 = vld [vmem:[%s1] sm:$0xff]
        %v253 = vld [vmem:[%s1 + $0x8] sm:$0x1]
        %v254 = vld [vmem:[%s1 + $0x10] sm:$0xff]
        %v255 = vld [vmem:[%s1 + $0x18] sm:$0x1]
        %v256 = vld [vmem:[%s2] sm:$0x3]
        %s257 = scalar_lea.vmem [#allocation2], 16
        %v258 = vld [vmem:[%s257 + $0x1] sm:$0xff]
        %v259 = vld [vmem:[%s257 + $0x11] sm:$0xff]
        %v260 = vld [vmem:[%s257 + $0x21] sm:$0xff]
        %v261 = vld [vmem:[%s257 + $0x31] sm:$0xff]
        %v262 = vld [vmem:[%s257 + $0x41] sm:$0xff]
        %v263 = vld [vmem:[%s257 + $0x51] sm:$0xff]
        %v264 = vld [vmem:[%s257 + $0x61] sm:$0xff]
        %v265 = vld [vmem:[%s257 + $0x71] sm:$0xff]
        %v266 = vlaneseq
        %v267 = vshrl.u32 %v266, 7
        %v268 = vsub.s32 0, %v267
        %v269 = vrot.slane %v252, %v268
        %v270 = vmul.f32 %v258, %v269
        %v271 = vmul.f32 %v259, %v269
        %v272 = vmul.f32 %v260, %v269
        %v273 = vmul.f32 %v261, %v269
        %v274 = vmul.f32 %v262, %v269
        %v275 = vmul.f32 %v263, %v269
        %v276 = vmul.f32 %v264, %v269
        %v277 = vmul.f32 %v265, %v269
        %v278 = vld [vmem:[%s257 + $0x2] sm:$0xff]
        %v279 = vld [vmem:[%s257 + $0x12] sm:$0xff]
        %v280 = vld [vmem:[%s257 + $0x22] sm:$0xff]
        %v281 = vld [vmem:[%s257 + $0x32] sm:$0xff]
        %v282 = vld [vmem:[%s257 + $0x42] sm:$0xff]
        %v283 = vld [vmem:[%s257 + $0x52] sm:$0xff]
        %v284 = vld [vmem:[%s257 + $0x62] sm:$0xff]
        %v285 = vld [vmem:[%s257 + $0x72] sm:$0xff]
        %v286 = vlaneseq
        %v287 = vshrl.u32 %v286, 7
        %v288 = vsub.s32 1, %v287
        %v289 = vrot.slane %v252, %v288
        %v290 = vmul.f32 %v278, %v289
        %v291 = vmul.f32 %v279, %v289
        %v292 = vmul.f32 %v280, %v289
        %v293 = vmul.f32 %v281, %v289
        %v294 = vmul.f32 %v282, %v289
        %v295 = vmul.f32 %v283, %v289
        %v296 = vmul.f32 %v284, %v289
        %v297 = vmul.f32 %v285, %v289
        %v298 = vadd.f32 %v270, %v290
        %v299 = vadd.f32 %v271, %v291
        %v300 = vadd.f32 %v272, %v292
        %v301 = vadd.f32 %v273, %v293
        %v302 = vadd.f32 %v274, %v294
        %v303 = vadd.f32 %v275, %v295
        %v304 = vadd.f32 %v276, %v296
        %v305 = vadd.f32 %v277, %v297
        %v306 = vld [vmem:[%s257 + $0x3] sm:$0xff]
        %v307 = vld [vmem:[%s257 + $0x13] sm:$0xff]
        %v308 = vld [vmem:[%s257 + $0x23] sm:$0xff]
        %v309 = vld [vmem:[%s257 + $0x33] sm:$0xff]
        %v310 = vld [vmem:[%s257 + $0x43] sm:$0xff]
        %v311 = vld [vmem:[%s257 + $0x53] sm:$0xff]
        %v312 = vld [vmem:[%s257 + $0x63] sm:$0xff]
        %v313 = vld [vmem:[%s257 + $0x73] sm:$0xff]
        %v314 = vlaneseq
        %v315 = vshrl.u32 %v314, 7
        %v316 = vsub.s32 2, %v315
        %v317 = vrot.slane %v252, %v316
        %v318 = vmul.f32 %v306, %v317
        %v319 = vmul.f32 %v307, %v317
        %v320 = vmul.f32 %v308, %v317
        %v321 = vmul.f32 %v309, %v317
        %v322 = vmul.f32 %v310, %v317
        %v323 = vmul.f32 %v311, %v317
        %v324 = vmul.f32 %v312, %v317
        %v325 = vmul.f32 %v313, %v317
        %v326 = vadd.f32 %v298, %v318
        %v327 = vadd.f32 %v299, %v319
        %v328 = vadd.f32 %v300, %v320
        %v329 = vadd.f32 %v301, %v321
        %v330 = vadd.f32 %v302, %v322
        %v331 = vadd.f32 %v303, %v323
        %v332 = vadd.f32 %v304, %v324
        %v333 = vadd.f32 %v305, %v325
        %v334 = vld [vmem:[%s243 + $0x1] sm:$0xff]
        %v335 = vld [vmem:[%s243 + $0x11] sm:$0xff]
        %v336 = vld [vmem:[%s243 + $0x21] sm:$0xff]
        %v337 = vld [vmem:[%s243 + $0x31] sm:$0xff]
        %v338 = vld [vmem:[%s243 + $0x41] sm:$0xff]
        %v339 = vld [vmem:[%s243 + $0x51] sm:$0xff]
        %v340 = vld [vmem:[%s243 + $0x61] sm:$0xff]
        %v341 = vld [vmem:[%s243 + $0x71] sm:$0xff]
        %v342 = vlaneseq
        %v343 = vshrl.u32 %v342, 7
        %v344 = vsub.s32 3, %v343
        %v345 = vrot.slane %v252, %v344
        %v346 = vmul.f32 %v334, %v345
        %v347 = vmul.f32 %v335, %v345
        %v348 = vmul.f32 %v336, %v345
        %v349 = vmul.f32 %v337, %v345
        %v350 = vmul.f32 %v338, %v345
        %v351 = vmul.f32 %v339, %v345
        %v352 = vmul.f32 %v340, %v345
        %v353 = vmul.f32 %v341, %v345
        %v354 = vadd.f32 %v326, %v346
        %v355 = vadd.f32 %v327, %v347
        %v356 = vadd.f32 %v328, %v348
        %v357 = vadd.f32 %v329, %v349
        %v358 = vadd.f32 %v330, %v350
        %v359 = vadd.f32 %v331, %v351
        %v360 = vadd.f32 %v332, %v352
        %v361 = vadd.f32 %v333, %v353
        %v362 = vld [vmem:[%s243 + $0x2] sm:$0xff]
        %v363 = vld [vmem:[%s243 + $0x12] sm:$0xff]
        %v364 = vld [vmem:[%s243 + $0x22] sm:$0xff]
        %v365 = vld [vmem:[%s243 + $0x32] sm:$0xff]
        %v366 = vld [vmem:[%s243 + $0x42] sm:$0xff]
        %v367 = vld [vmem:[%s243 + $0x52] sm:$0xff]
        %v368 = vld [vmem:[%s243 + $0x62] sm:$0xff]
        %v369 = vld [vmem:[%s243 + $0x72] sm:$0xff]
        %v370 = vlaneseq
        %v371 = vshrl.u32 %v370, 7
        %v372 = vsub.s32 4, %v371
        %v373 = vrot.slane %v252, %v372
        %v374 = vmul.f32 %v362, %v373
        %v375 = vmul.f32 %v363, %v373
        %v376 = vmul.f32 %v364, %v373
        %v377 = vmul.f32 %v365, %v373
        %v378 = vmul.f32 %v366, %v373
        %v379 = vmul.f32 %v367, %v373
        %v380 = vmul.f32 %v368, %v373
        %v381 = vmul.f32 %v369, %v373
        %v382 = vadd.f32 %v354, %v374
        %v383 = vadd.f32 %v355, %v375
        %v384 = vadd.f32 %v356, %v376
        %v385 = vadd.f32 %v357, %v377
        %v386 = vadd.f32 %v358, %v378
        %v387 = vadd.f32 %v359, %v379
        %v388 = vadd.f32 %v360, %v380
        %v389 = vadd.f32 %v361, %v381
        %v390 = vld [vmem:[%s243 + $0x3] sm:$0xff]
        %v391 = vld [vmem:[%s243 + $0x13] sm:$0xff]
        %v392 = vld [vmem:[%s243 + $0x23] sm:$0xff]
        %v393 = vld [vmem:[%s243 + $0x33] sm:$0xff]
        %v394 = vld [vmem:[%s243 + $0x43] sm:$0xff]
        %v395 = vld [vmem:[%s243 + $0x53] sm:$0xff]
        %v396 = vld [vmem:[%s243 + $0x63] sm:$0xff]
        %v397 = vld [vmem:[%s243 + $0x73] sm:$0xff]
        %v398 = vlaneseq
        %v399 = vshrl.u32 %v398, 7
        %v400 = vsub.s32 5, %v399
        %v401 = vrot.slane %v252, %v400
        %v402 = vmul.f32 %v390, %v401
        %v403 = vmul.f32 %v391, %v401
        %v404 = vmul.f32 %v392, %v401
        %v405 = vmul.f32 %v393, %v401
        %v406 = vmul.f32 %v394, %v401
        %v407 = vmul.f32 %v395, %v401
        %v408 = vmul.f32 %v396, %v401
        %v409 = vmul.f32 %v397, %v401
        %v410 = vadd.f32 %v382, %v402
        %v411 = vadd.f32 %v383, %v403
        %v412 = vadd.f32 %v384, %v404
        %v413 = vadd.f32 %v385, %v405
        %v414 = vadd.f32 %v386, %v406
        %v415 = vadd.f32 %v387, %v407
        %v416 = vadd.f32 %v388, %v408
        %v417 = vadd.f32 %v389, %v409
        %s418 = scalar_lea.vmem [#allocation2], 48
        %v419 = vld [vmem:[%s418 + $0x1] sm:$0xff]
        %v420 = vld [vmem:[%s418 + $0x11] sm:$0xff]
        %v421 = vld [vmem:[%s418 + $0x21] sm:$0xff]
        %v422 = vld [vmem:[%s418 + $0x31] sm:$0xff]
        %v423 = vld [vmem:[%s418 + $0x41] sm:$0xff]
        %v424 = vld [vmem:[%s418 + $0x51] sm:$0xff]
        %v425 = vld [vmem:[%s418 + $0x61] sm:$0xff]
        %v426 = vld [vmem:[%s418 + $0x71] sm:$0xff]
        %v427 = vlaneseq
        %v428 = vshrl.u32 %v427, 7
        %v429 = vsub.s32 6, %v428
        %v430 = vrot.slane %v252, %v429
        %v431 = vmul.f32 %v419, %v430
        %v432 = vmul.f32 %v420, %v430
        %v433 = vmul.f32 %v421, %v430
        %v434 = vmul.f32 %v422, %v430
        %v435 = vmul.f32 %v423, %v430
        %v436 = vmul.f32 %v424, %v430
        %v437 = vmul.f32 %v425, %v430
        %v438 = vmul.f32 %v426, %v430
        %v439 = vadd.f32 %v410, %v431
        %v440 = vadd.f32 %v411, %v432
        %v441 = vadd.f32 %v412, %v433
        %v442 = vadd.f32 %v413, %v434
        %v443 = vadd.f32 %v414, %v435
        %v444 = vadd.f32 %v415, %v436
        %v445 = vadd.f32 %v416, %v437
        %v446 = vadd.f32 %v417, %v438
        %v447 = vld [vmem:[%s418 + $0x2] sm:$0xff]
        %v448 = vld [vmem:[%s418 + $0x12] sm:$0xff]
        %v449 = vld [vmem:[%s418 + $0x22] sm:$0xff]
        %v450 = vld [vmem:[%s418 + $0x32] sm:$0xff]
        %v451 = vld [vmem:[%s418 + $0x42] sm:$0xff]
        %v452 = vld [vmem:[%s418 + $0x52] sm:$0xff]
        %v453 = vld [vmem:[%s418 + $0x62] sm:$0xff]
        %v454 = vld [vmem:[%s418 + $0x72] sm:$0xff]
        %v455 = vlaneseq
        %v456 = vshrl.u32 %v455, 7
        %v457 = vsub.s32 7, %v456
        %v458 = vrot.slane %v252, %v457
        %v459 = vmul.f32 %v447, %v458
        %v460 = vmul.f32 %v448, %v458
        %v461 = vmul.f32 %v449, %v458
        %v462 = vmul.f32 %v450, %v458
        %v463 = vmul.f32 %v451, %v458
        %v464 = vmul.f32 %v452, %v458
        %v465 = vmul.f32 %v453, %v458
        %v466 = vmul.f32 %v454, %v458
        %v467 = vadd.f32 %v439, %v459
        %v468 = vadd.f32 %v440, %v460
        %v469 = vadd.f32 %v441, %v461
        %v470 = vadd.f32 %v442, %v462
        %v471 = vadd.f32 %v443, %v463
        %v472 = vadd.f32 %v444, %v464
        %v473 = vadd.f32 %v445, %v465
        %v474 = vadd.f32 %v446, %v466
        %v475 = vld [vmem:[%s418 + $0x3] sm:$0xff]
        %v476 = vld [vmem:[%s418 + $0x13] sm:$0xff]
        %v477 = vld [vmem:[%s418 + $0x23] sm:$0xff]
        %v478 = vld [vmem:[%s418 + $0x33] sm:$0xff]
        %v479 = vld [vmem:[%s418 + $0x43] sm:$0xff]
        %v480 = vld [vmem:[%s418 + $0x53] sm:$0xff]
        %v481 = vld [vmem:[%s418 + $0x63] sm:$0xff]
        %v482 = vld [vmem:[%s418 + $0x73] sm:$0xff]
        %v483 = vlaneseq
        %v484 = vshrl.u32 %v483, 7
        %v485 = vsub.s32 0, %v484
        %v486 = vrot.slane %v253, %v485
        %v487 = vmul.f32 %v475, %v486
        %v488 = vmul.f32 %v476, %v486
        %v489 = vmul.f32 %v477, %v486
        %v490 = vmul.f32 %v478, %v486
        %v491 = vmul.f32 %v479, %v486
        %v492 = vmul.f32 %v480, %v486
        %v493 = vmul.f32 %v481, %v486
        %v494 = vmul.f32 %v482, %v486
        %v495 = vadd.f32 %v467, %v487
        %v496 = vadd.f32 %v468, %v488
        %v497 = vadd.f32 %v469, %v489
        %v498 = vadd.f32 %v470, %v490
        %v499 = vadd.f32 %v471, %v491
        %v500 = vadd.f32 %v472, %v492
        %v501 = vadd.f32 %v473, %v493
        %v502 = vadd.f32 %v474, %v494
        %v503 = vlaneseq
        %v504 = vshrl.u32 %v503, 7
        %v505 = vsub.s32 0, %v504
        %v506 = vrot.slane %v256, %v505
        %v507 = vadd.f32 %v495, %v506
        %v508 = vadd.f32 %v496, %v506
        %v509 = vadd.f32 %v497, %v506
        %v510 = vadd.f32 %v498, %v506
        %v511 = vadd.f32 %v499, %v506
        %v512 = vadd.f32 %v500, %v506
        %v513 = vadd.f32 %v501, %v506
        %v514 = vadd.f32 %v502, %v506
        %v515 = vmax.f32 %v507, 0.0
        %v516 = vmax.f32 %v508, 0.0
        %v517 = vmax.f32 %v509, 0.0
        %v518 = vmax.f32 %v510, 0.0
        %v519 = vmax.f32 %v511, 0.0
        %v520 = vmax.f32 %v512, 0.0
        %v521 = vmax.f32 %v513, 0.0
        %v522 = vmax.f32 %v514, 0.0
        %v523 = vpack.c.bf16 %v515, %v515
        %v524 = vpack.c.bf16 %v516, %v516
        %v525 = vpack.c.bf16 %v517, %v517
        %v526 = vpack.c.bf16 %v518, %v518
        %v527 = vpack.c.bf16 %v519, %v519
        %v528 = vpack.c.bf16 %v520, %v520
        %v529 = vpack.c.bf16 %v521, %v521
        %v530 = vpack.c.bf16 %v522, %v522
        %531 = vst.msk [vmem:[%s187] sm:$0xf] %vm203, %v523
        %532 = vst.msk [vmem:[%s187 + $0x4] sm:$0xf] %vm203, %v524
        %533 = vst.msk [vmem:[%s187 + $0x8] sm:$0xf] %vm203, %v525
        %534 = vst.msk [vmem:[%s187 + $0xc] sm:$0xf] %vm203, %v526
        %535 = vst.msk [vmem:[%s187 + $0x10] sm:$0xf] %vm203, %v527
        %536 = vst.msk [vmem:[%s187 + $0x14] sm:$0xf] %vm203, %v528
        %537 = vst.msk [vmem:[%s187 + $0x18] sm:$0xf] %vm203, %v529
        %538 = vst.msk [vmem:[%s187 + $0x1c] sm:$0xf] %vm203, %v530
        %v539 = vld [vmem:[#allocation2] sm:$0xff]
        %v540 = vld [vmem:[#allocation2 + $0x10] sm:$0xff]
        %v541 = vld [vmem:[#allocation2 + $0x20] sm:$0xff]
        %v542 = vld [vmem:[#allocation2 + $0x30] sm:$0xff]
        %v543 = vld [vmem:[#allocation2 + $0x40] sm:$0xff]
        %v544 = vld [vmem:[#allocation2 + $0x50] sm:$0xff]
        %v545 = vld [vmem:[#allocation2 + $0x60] sm:$0xff]
        %v546 = vld [vmem:[#allocation2 + $0x70] sm:$0xff]
        %v547 = vlaneseq
        %v548 = vshrl.u32 %v547, 7
        %v549 = vsub.s32 0, %v548
        %v550 = vrot.slane %v254, %v549
        %v551 = vmul.f32 %v539, %v550
        %v552 = vmul.f32 %v540, %v550
        %v553 = vmul.f32 %v541, %v550
        %v554 = vmul.f32 %v542, %v550
        %v555 = vmul.f32 %v543, %v550
        %v556 = vmul.f32 %v544, %v550
        %v557 = vmul.f32 %v545, %v550
        %v558 = vmul.f32 %v546, %v550
        %v559 = vld [vmem:[#allocation2 + $0x2] sm:$0xff]
        %v560 = vld [vmem:[#allocation2 + $0x12] sm:$0xff]
        %v561 = vld [vmem:[#allocation2 + $0x22] sm:$0xff]
        %v562 = vld [vmem:[#allocation2 + $0x32] sm:$0xff]
        %v563 = vld [vmem:[#allocation2 + $0x42] sm:$0xff]
        %v564 = vld [vmem:[#allocation2 + $0x52] sm:$0xff]
        %v565 = vld [vmem:[#allocation2 + $0x62] sm:$0xff]
        %v566 = vld [vmem:[#allocation2 + $0x72] sm:$0xff]
        %v567 = vlaneseq
        %v568 = vshrl.u32 %v567, 7
        %v569 = vsub.s32 1, %v568
        %v570 = vrot.slane %v254, %v569
        %v571 = vmul.f32 %v559, %v570
        %v572 = vmul.f32 %v560, %v570
        %v573 = vmul.f32 %v561, %v570
        %v574 = vmul.f32 %v562, %v570
        %v575 = vmul.f32 %v563, %v570
        %v576 = vmul.f32 %v564, %v570
        %v577 = vmul.f32 %v565, %v570
        %v578 = vmul.f32 %v566, %v570
        %v579 = vadd.f32 %v551, %v571
        %v580 = vadd.f32 %v552, %v572
        %v581 = vadd.f32 %v553, %v573
        %v582 = vadd.f32 %v554, %v574
        %v583 = vadd.f32 %v555, %v575
        %v584 = vadd.f32 %v556, %v576
        %v585 = vadd.f32 %v557, %v577
        %v586 = vadd.f32 %v558, %v578
        %v587 = vld [vmem:[#allocation2 + $0x4] sm:$0xff]
        %v588 = vld [vmem:[#allocation2 + $0x14] sm:$0xff]
        %v589 = vld [vmem:[#allocation2 + $0x24] sm:$0xff]
        %v590 = vld [vmem:[#allocation2 + $0x34] sm:$0xff]
        %v591 = vld [vmem:[#allocation2 + $0x44] sm:$0xff]
        %v592 = vld [vmem:[#allocation2 + $0x54] sm:$0xff]
        %v593 = vld [vmem:[#allocation2 + $0x64] sm:$0xff]
        %v594 = vld [vmem:[#allocation2 + $0x74] sm:$0xff]
        %v595 = vlaneseq
        %v596 = vshrl.u32 %v595, 7
        %v597 = vsub.s32 2, %v596
        %v598 = vrot.slane %v254, %v597
        %v599 = vmul.f32 %v587, %v598
        %v600 = vmul.f32 %v588, %v598
        %v601 = vmul.f32 %v589, %v598
        %v602 = vmul.f32 %v590, %v598
        %v603 = vmul.f32 %v591, %v598
        %v604 = vmul.f32 %v592, %v598
        %v605 = vmul.f32 %v593, %v598
        %v606 = vmul.f32 %v594, %v598
        %v607 = vadd.f32 %v579, %v599
        %v608 = vadd.f32 %v580, %v600
        %v609 = vadd.f32 %v581, %v601
        %v610 = vadd.f32 %v582, %v602
        %v611 = vadd.f32 %v583, %v603
        %v612 = vadd.f32 %v584, %v604
        %v613 = vadd.f32 %v585, %v605
        %v614 = vadd.f32 %v586, %v606
        %v615 = vld [vmem:[%s243] sm:$0xff]
        %v616 = vld [vmem:[%s243 + $0x10] sm:$0xff]
        %v617 = vld [vmem:[%s243 + $0x20] sm:$0xff]
        %v618 = vld [vmem:[%s243 + $0x30] sm:$0xff]
        %v619 = vld [vmem:[%s243 + $0x40] sm:$0xff]
        %v620 = vld [vmem:[%s243 + $0x50] sm:$0xff]
        %v621 = vld [vmem:[%s243 + $0x60] sm:$0xff]
        %v622 = vld [vmem:[%s243 + $0x70] sm:$0xff]
        %v623 = vlaneseq
        %v624 = vshrl.u32 %v623, 7
        %v625 = vsub.s32 3, %v624
        %v626 = vrot.slane %v254, %v625
        %v627 = vmul.f32 %v615, %v626
        %v628 = vmul.f32 %v616, %v626
        %v629 = vmul.f32 %v617, %v626
        %v630 = vmul.f32 %v618, %v626
        %v631 = vmul.f32 %v619, %v626
        %v632 = vmul.f32 %v620, %v626
        %v633 = vmul.f32 %v621, %v626
        %v634 = vmul.f32 %v622, %v626
        %v635 = vadd.f32 %v607, %v627
        %v636 = vadd.f32 %v608, %v628
        %v637 = vadd.f32 %v609, %v629
        %v638 = vadd.f32 %v610, %v630
        %v639 = vadd.f32 %v611, %v631
        %v640 = vadd.f32 %v612, %v632
        %v641 = vadd.f32 %v613, %v633
        %v642 = vadd.f32 %v614, %v634
        %v643 = vld [vmem:[%s243 + $0x2] sm:$0xff]
        %v644 = vld [vmem:[%s243 + $0x12] sm:$0xff]
        %v645 = vld [vmem:[%s243 + $0x22] sm:$0xff]
        %v646 = vld [vmem:[%s243 + $0x32] sm:$0xff]
        %v647 = vld [vmem:[%s243 + $0x42] sm:$0xff]
        %v648 = vld [vmem:[%s243 + $0x52] sm:$0xff]
        %v649 = vld [vmem:[%s243 + $0x62] sm:$0xff]
        %v650 = vld [vmem:[%s243 + $0x72] sm:$0xff]
        %v651 = vlaneseq
        %v652 = vshrl.u32 %v651, 7
        %v653 = vsub.s32 4, %v652
        %v654 = vrot.slane %v254, %v653
        %v655 = vmul.f32 %v643, %v654
        %v656 = vmul.f32 %v644, %v654
        %v657 = vmul.f32 %v645, %v654
        %v658 = vmul.f32 %v646, %v654
        %v659 = vmul.f32 %v647, %v654
        %v660 = vmul.f32 %v648, %v654
        %v661 = vmul.f32 %v649, %v654
        %v662 = vmul.f32 %v650, %v654
        %v663 = vadd.f32 %v635, %v655
        %v664 = vadd.f32 %v636, %v656
        %v665 = vadd.f32 %v637, %v657
        %v666 = vadd.f32 %v638, %v658
        %v667 = vadd.f32 %v639, %v659
        %v668 = vadd.f32 %v640, %v660
        %v669 = vadd.f32 %v641, %v661
        %v670 = vadd.f32 %v642, %v662
        %v671 = vld [vmem:[%s243 + $0x4] sm:$0xff]
        %v672 = vld [vmem:[%s243 + $0x14] sm:$0xff]
        %v673 = vld [vmem:[%s243 + $0x24] sm:$0xff]
        %v674 = vld [vmem:[%s243 + $0x34] sm:$0xff]
        %v675 = vld [vmem:[%s243 + $0x44] sm:$0xff]
        %v676 = vld [vmem:[%s243 + $0x54] sm:$0xff]
        %v677 = vld [vmem:[%s243 + $0x64] sm:$0xff]
        %v678 = vld [vmem:[%s243 + $0x74] sm:$0xff]
        %v679 = vlaneseq
        %v680 = vshrl.u32 %v679, 7
        %v681 = vsub.s32 5, %v680
        %v682 = vrot.slane %v254, %v681
        %v683 = vmul.f32 %v671, %v682
        %v684 = vmul.f32 %v672, %v682
        %v685 = vmul.f32 %v673, %v682
        %v686 = vmul.f32 %v674, %v682
        %v687 = vmul.f32 %v675, %v682
        %v688 = vmul.f32 %v676, %v682
        %v689 = vmul.f32 %v677, %v682
        %v690 = vmul.f32 %v678, %v682
        %v691 = vadd.f32 %v663, %v683
        %v692 = vadd.f32 %v664, %v684
        %v693 = vadd.f32 %v665, %v685
        %v694 = vadd.f32 %v666, %v686
        %v695 = vadd.f32 %v667, %v687
        %v696 = vadd.f32 %v668, %v688
        %v697 = vadd.f32 %v669, %v689
        %v698 = vadd.f32 %v670, %v690
        %s699 = scalar_lea.vmem [#allocation2], 64
        %v700 = vld [vmem:[%s699] sm:$0xff]
        %v701 = vld [vmem:[%s699 + $0x10] sm:$0xff]
        %v702 = vld [vmem:[%s699 + $0x20] sm:$0xff]
        %v703 = vld [vmem:[%s699 + $0x30] sm:$0xff]
        %v704 = vld [vmem:[%s699 + $0x40] sm:$0xff]
        %v705 = vld [vmem:[%s699 + $0x50] sm:$0xff]
        %v706 = vld [vmem:[%s699 + $0x60] sm:$0xff]
        %v707 = vld [vmem:[%s699 + $0x70] sm:$0xff]
        %v708 = vlaneseq
        %v709 = vshrl.u32 %v708, 7
        %v710 = vsub.s32 6, %v709
        %v711 = vrot.slane %v254, %v710
        %v712 = vmul.f32 %v700, %v711
        %v713 = vmul.f32 %v701, %v711
        %v714 = vmul.f32 %v702, %v711
        %v715 = vmul.f32 %v703, %v711
        %v716 = vmul.f32 %v704, %v711
        %v717 = vmul.f32 %v705, %v711
        %v718 = vmul.f32 %v706, %v711
        %v719 = vmul.f32 %v707, %v711
        %v720 = vadd.f32 %v691, %v712
        %v721 = vadd.f32 %v692, %v713
        %v722 = vadd.f32 %v693, %v714
        %v723 = vadd.f32 %v694, %v715
        %v724 = vadd.f32 %v695, %v716
        %v725 = vadd.f32 %v696, %v717
        %v726 = vadd.f32 %v697, %v718
        %v727 = vadd.f32 %v698, %v719
        %v728 = vld [vmem:[%s699 + $0x2] sm:$0xff]
        %v729 = vld [vmem:[%s699 + $0x12] sm:$0xff]
        %v730 = vld [vmem:[%s699 + $0x22] sm:$0xff]
        %v731 = vld [vmem:[%s699 + $0x32] sm:$0xff]
        %v732 = vld [vmem:[%s699 + $0x42] sm:$0xff]
        %v733 = vld [vmem:[%s699 + $0x52] sm:$0xff]
        %v734 = vld [vmem:[%s699 + $0x62] sm:$0xff]
        %v735 = vld [vmem:[%s699 + $0x72] sm:$0xff]
        %v736 = vlaneseq
        %v737 = vshrl.u32 %v736, 7
        %v738 = vsub.s32 7, %v737
        %v739 = vrot.slane %v254, %v738
        %v740 = vmul.f32 %v728, %v739
        %v741 = vmul.f32 %v729, %v739
        %v742 = vmul.f32 %v730, %v739
        %v743 = vmul.f32 %v731, %v739
        %v744 = vmul.f32 %v732, %v739
        %v745 = vmul.f32 %v733, %v739
        %v746 = vmul.f32 %v734, %v739
        %v747 = vmul.f32 %v735, %v739
        %v748 = vadd.f32 %v720, %v740
        %v749 = vadd.f32 %v721, %v741
        %v750 = vadd.f32 %v722, %v742
        %v751 = vadd.f32 %v723, %v743
        %v752 = vadd.f32 %v724, %v744
        %v753 = vadd.f32 %v725, %v745
        %v754 = vadd.f32 %v726, %v746
        %v755 = vadd.f32 %v727, %v747
        %v756 = vld [vmem:[%s699 + $0x4] sm:$0xff]
        %v757 = vld [vmem:[%s699 + $0x14] sm:$0xff]
        %v758 = vld [vmem:[%s699 + $0x24] sm:$0xff]
        %v759 = vld [vmem:[%s699 + $0x34] sm:$0xff]
        %v760 = vld [vmem:[%s699 + $0x44] sm:$0xff]
        %v761 = vld [vmem:[%s699 + $0x54] sm:$0xff]
        %v762 = vld [vmem:[%s699 + $0x64] sm:$0xff]
        %v763 = vld [vmem:[%s699 + $0x74] sm:$0xff]
        %v764 = vlaneseq
        %v765 = vshrl.u32 %v764, 7
        %v766 = vsub.s32 0, %v765
        %v767 = vrot.slane %v255, %v766
        %v768 = vmul.f32 %v756, %v767
        %v769 = vmul.f32 %v757, %v767
        %v770 = vmul.f32 %v758, %v767
        %v771 = vmul.f32 %v759, %v767
        %v772 = vmul.f32 %v760, %v767
        %v773 = vmul.f32 %v761, %v767
        %v774 = vmul.f32 %v762, %v767
        %v775 = vmul.f32 %v763, %v767
        %v776 = vadd.f32 %v748, %v768
        %v777 = vadd.f32 %v749, %v769
        %v778 = vadd.f32 %v750, %v770
        %v779 = vadd.f32 %v751, %v771
        %v780 = vadd.f32 %v752, %v772
        %v781 = vadd.f32 %v753, %v773
        %v782 = vadd.f32 %v754, %v774
        %v783 = vadd.f32 %v755, %v775
        %v784 = vlaneseq
        %v785 = vshrl.u32 %v784, 7
        %v786 = vsub.s32 1, %v785
        %v787 = vrot.slane %v256, %v786
        %v788 = vadd.f32 %v776, %v787
        %v789 = vadd.f32 %v777, %v787
        %v790 = vadd.f32 %v778, %v787
        %v791 = vadd.f32 %v779, %v787
        %v792 = vadd.f32 %v780, %v787
        %v793 = vadd.f32 %v781, %v787
        %v794 = vadd.f32 %v782, %v787
        %v795 = vadd.f32 %v783, %v787
        %v796 = vmax.f32 %v788, 0.0
        %v797 = vmax.f32 %v789, 0.0
        %v798 = vmax.f32 %v790, 0.0
        %v799 = vmax.f32 %v791, 0.0
        %v800 = vmax.f32 %v792, 0.0
        %v801 = vmax.f32 %v793, 0.0
        %v802 = vmax.f32 %v794, 0.0
        %v803 = vmax.f32 %v795, 0.0
        %v804 = vpack.c.bf16 %v796, %v796
        %v805 = vpack.c.bf16 %v797, %v797
        %v806 = vpack.c.bf16 %v798, %v798
        %v807 = vpack.c.bf16 %v799, %v799
        %v808 = vpack.c.bf16 %v800, %v800
        %v809 = vpack.c.bf16 %v801, %v801
        %v810 = vpack.c.bf16 %v802, %v802
        %v811 = vpack.c.bf16 %v803, %v803
        %s812 = scalar_lea.vmem %s187, 32 [#allocation3]
        %813 = vst.msk [vmem:[%s812] sm:$0xf] %vm203, %v804
        %814 = vst.msk [vmem:[%s812 + $0x4] sm:$0xf] %vm203, %v805
        %815 = vst.msk [vmem:[%s812 + $0x8] sm:$0xf] %vm203, %v806
        %816 = vst.msk [vmem:[%s812 + $0xc] sm:$0xf] %vm203, %v807
        %817 = vst.msk [vmem:[%s812 + $0x10] sm:$0xf] %vm203, %v808
        %818 = vst.msk [vmem:[%s812 + $0x14] sm:$0xf] %vm203, %v809
        %819 = vst.msk [vmem:[%s812 + $0x18] sm:$0xf] %vm203, %v810
        %820 = vst.msk [vmem:[%s812 + $0x1c] sm:$0xf] %vm203, %v811
        %v821 = vadd.f32 %v515, %v796
        %v822 = vadd.f32 %v516, %v797
        %v823 = vadd.f32 %v517, %v798
        %v824 = vadd.f32 %v518, %v799
        %v825 = vadd.f32 %v519, %v800
        %v826 = vadd.f32 %v520, %v801
        %v827 = vadd.f32 %v521, %v802
        %v828 = vadd.f32 %v522, %v803
        %v829 = vsel %vm201, %v821, 0.0
        %v830 = vsel %vm201, %v822, 0.0
        %v831 = vadd.f32 %v829, %v830
        %v832 = vsel %vm201, %v823, 0.0
        %v833 = vadd.f32 %v831, %v832
        %v834 = vsel %vm201, %v824, 0.0
        %v835 = vadd.f32 %v833, %v834
        %v836 = vsel %vm201, %v825, 0.0
        %v837 = vadd.f32 %v835, %v836
        %v838 = vsel %vm201, %v826, 0.0
        %v839 = vadd.f32 %v837, %v838
        %v840 = vsel %vm201, %v827, 0.0
        %v841 = vadd.f32 %v839, %v840
        %v842 = vsel %vm201, %v828, 0.0
        %v843 = vadd.f32 %v841, %v842
        %v844 = vsel %vm201, %v843, 0.0
        %v845 = vrot.slane %v844, 4
        %v846 = vadd.f32 %v844, %v845
        %v847 = vrot.slane %v846, 2
        %v848 = vadd.f32 %v846, %v847
        %v849 = vrot.slane %v848, 1
        %v850 = vadd.f32 %v848, %v849
        %v851 = vmul.f32 %v850, 0.015625
        %vm852 = vcmask 253952
        %853 = vst.msk [vmem:[%s200] sm:$0x1] %vm852, %v851
        %s854 = sand.u32 %s92, 1
        %s855 = sand.u32 %s92, 1
        %s856 = smul.addr %s855, 64
        %s857 = scalar_lea.vmem [#allocation3], %s856
        %p858 = scmp.lt.s32.totalorder %s16, 1
        %s859 = scalar_select %p858, %s16, 1
        %s860 = scalar_lea.vmem %s4, %s859
        // Predicated region
        $region33: #{sknet_bottleneck_forward.4} parent=31 // pred_check
          %p861 = pneg %p102
        $region34: #{sknet_bottleneck_forward.4} parent=31 // pred_check_branch
          %863 = sbr.rel (%p861) target = $region36
        $region35: #{sknet_bottleneck_forward.4} parent=31 // pred_region
          %s864 = smul.addr %s16, 8
          %s865 = smul.addr %s864, 4
          %s866 = scalar_lea.vmem %s3, %s865
          // Predicated region
          $region37: #{sknet_bottleneck_forward.4} parent=35 // pred_check
            _
          $region38: #{sknet_bottleneck_forward.4} parent=35 // pred_check_branch
            %868 = sbr.rel (0) target = $region40
          $region39: #{sknet_bottleneck_forward.4} parent=35 // pred_region
            // Predicated region
            $region41: #{sknet_bottleneck_forward.4} parent=39 // pred_check
              _
            $region42: #{sknet_bottleneck_forward.4} parent=39 // pred_check_branch
              %870 = sbr.rel target = $region44
            $region43: #{sknet_bottleneck_forward.4} parent=39 // pred_region
              // Predicated region
              $region56: #{sknet_bottleneck_forward.4} parent=43 // pred_check
                _
              $region57: #{sknet_bottleneck_forward.4} parent=43 // pred_check_branch
                %915 = sbr.rel (0) target = $region59
              $region58: #{sknet_bottleneck_forward.4} parent=43 // pred_region
                loop: start=0, step=1, limit=1
                $region60: #{sknet_bottleneck_forward.4} parent=58 // loop_pre_header
                  _
                $region61: #{sknet_bottleneck_forward.4} parent=58 // loop_header
                  %s917 = sphi 0, %s921
                  %p918 = scmp.ge.s32.totalorder %s917, 1
                  %s922 = sphi %s857, %s857
                  %s923 = sphi %s866, %s866
                $region62: #{sknet_bottleneck_forward.4} parent=58 // loop_header_branch
                  %920 = sbr.rel (%p918) target = $region66
                $region63: #{sknet_bottleneck_forward.4} parent=58 // loop_body
                  _
                $region64: #{sknet_bottleneck_forward.4} parent=58 // loop_footer
                  %s921 = sadd.s32 1, %s917
                $region65: #{sknet_bottleneck_forward.4} parent=58 // loop_footer_branch
                  %916 = sbr.rel target = $region61
                $region66: #{sknet_bottleneck_forward.4} parent=58 // loop_exit
                  _
                loop: start=0, step=1, limit=1
                $region67: #{sknet_bottleneck_forward.4} parent=58 // loop_pre_header
                  _
                $region68: #{sknet_bottleneck_forward.4} parent=58 // loop_header
                  %s926 = sphi 0, %s930
                  %p927 = scmp.ge.s32.totalorder %s926, 1
                  %s931 = sphi %s857, %s857
                  %s932 = sphi %s866, %s866
                $region69: #{sknet_bottleneck_forward.4} parent=58 // loop_header_branch
                  %929 = sbr.rel (%p927) target = $region73
                $region70: #{sknet_bottleneck_forward.4} parent=58 // loop_body
                  %v933 = vld [vmem:[%s931] sm:$0xf]
                  %934 = vst [vmem:[%s932] sm:$0xf] %v933
                  %v935 = vld [vmem:[%s931 + $0x4] sm:$0xf]
                  %936 = vst [vmem:[%s932 + $0x4] sm:$0xf] %v935
                  %v937 = vld [vmem:[%s931 + $0x8] sm:$0xf]
                  %938 = vst [vmem:[%s932 + $0x8] sm:$0xf] %v937
                  %v939 = vld [vmem:[%s931 + $0xc] sm:$0xf]
                  %940 = vst [vmem:[%s932 + $0xc] sm:$0xf] %v939
                  %v941 = vld [vmem:[%s931 + $0x10] sm:$0xf]
                  %942 = vst [vmem:[%s932 + $0x10] sm:$0xf] %v941
                  %v943 = vld [vmem:[%s931 + $0x14] sm:$0xf]
                  %944 = vst [vmem:[%s932 + $0x14] sm:$0xf] %v943
                  %v945 = vld [vmem:[%s931 + $0x18] sm:$0xf]
                  %946 = vst [vmem:[%s932 + $0x18] sm:$0xf] %v945
                  %v947 = vld [vmem:[%s931 + $0x1c] sm:$0xf]
                  %948 = vst [vmem:[%s932 + $0x1c] sm:$0xf] %v947
                  %v949 = vld [vmem:[%s931 + $0x20] sm:$0xf]
                  %950 = vst [vmem:[%s932 + $0x40] sm:$0xf] %v949
                  %v951 = vld [vmem:[%s931 + $0x24] sm:$0xf]
                  %952 = vst [vmem:[%s932 + $0x44] sm:$0xf] %v951
                  %v953 = vld [vmem:[%s931 + $0x28] sm:$0xf]
                  %954 = vst [vmem:[%s932 + $0x48] sm:$0xf] %v953
                  %v955 = vld [vmem:[%s931 + $0x2c] sm:$0xf]
                  %956 = vst [vmem:[%s932 + $0x4c] sm:$0xf] %v955
                  %v957 = vld [vmem:[%s931 + $0x30] sm:$0xf]
                  %958 = vst [vmem:[%s932 + $0x50] sm:$0xf] %v957
                  %v959 = vld [vmem:[%s931 + $0x34] sm:$0xf]
                  %960 = vst [vmem:[%s932 + $0x54] sm:$0xf] %v959
                  %v961 = vld [vmem:[%s931 + $0x38] sm:$0xf]
                  %962 = vst [vmem:[%s932 + $0x58] sm:$0xf] %v961
                  %v963 = vld [vmem:[%s931 + $0x3c] sm:$0xf]
                  %964 = vst [vmem:[%s932 + $0x5c] sm:$0xf] %v963
                $region71: #{sknet_bottleneck_forward.4} parent=58 // loop_footer
                  %s930 = sadd.s32 1, %s926
                $region72: #{sknet_bottleneck_forward.4} parent=58 // loop_footer_branch
                  %925 = sbr.rel target = $region68
                $region73: #{sknet_bottleneck_forward.4} parent=58 // loop_exit
                  _
              $region59: #{sknet_bottleneck_forward.4} parent=43 // pred_fallthru
                _
            $region44: #{sknet_bottleneck_forward.4} parent=39 // pred_fallthru
              _
            // Predicated region
            $region45: #{sknet_bottleneck_forward.4} parent=39 // pred_check
              _
            $region46: #{sknet_bottleneck_forward.4} parent=39 // pred_check_branch
              %872 = sbr.rel (0) target = $region48
            $region47: #{sknet_bottleneck_forward.4} parent=39 // pred_region
              loop: start=0, step=1, limit=1
              $region49: #{sknet_bottleneck_forward.4} parent=47 // loop_pre_header
                _
              $region50: #{sknet_bottleneck_forward.4} parent=47 // loop_header
                %s875 = sphi 0, %s879
                %p876 = scmp.ge.s32.totalorder %s875, 1
                %s880 = sphi %s857, %s857
                %s881 = sphi %s866, %s866
              $region51: #{sknet_bottleneck_forward.4} parent=47 // loop_header_branch
                %878 = sbr.rel (%p876) target = $region55
              $region52: #{sknet_bottleneck_forward.4} parent=47 // loop_body
                %v882 = vld [vmem:[%s880] sm:$0xf]
                %883 = vst [vmem:[%s881] sm:$0xf] %v882
                %v884 = vld [vmem:[%s880 + $0x4] sm:$0xf]
                %885 = vst [vmem:[%s881 + $0x4] sm:$0xf] %v884
                %v886 = vld [vmem:[%s880 + $0x8] sm:$0xf]
                %887 = vst [vmem:[%s881 + $0x8] sm:$0xf] %v886
                %v888 = vld [vmem:[%s880 + $0xc] sm:$0xf]
                %889 = vst [vmem:[%s881 + $0xc] sm:$0xf] %v888
                %v890 = vld [vmem:[%s880 + $0x10] sm:$0xf]
                %891 = vst [vmem:[%s881 + $0x10] sm:$0xf] %v890
                %v892 = vld [vmem:[%s880 + $0x14] sm:$0xf]
                %893 = vst [vmem:[%s881 + $0x14] sm:$0xf] %v892
                %v894 = vld [vmem:[%s880 + $0x18] sm:$0xf]
                %895 = vst [vmem:[%s881 + $0x18] sm:$0xf] %v894
                %v896 = vld [vmem:[%s880 + $0x1c] sm:$0xf]
                %897 = vst [vmem:[%s881 + $0x1c] sm:$0xf] %v896
                %v898 = vld [vmem:[%s880 + $0x20] sm:$0xf]
                %899 = vst [vmem:[%s881 + $0x40] sm:$0xf] %v898
                %v900 = vld [vmem:[%s880 + $0x24] sm:$0xf]
                %901 = vst [vmem:[%s881 + $0x44] sm:$0xf] %v900
                %v902 = vld [vmem:[%s880 + $0x28] sm:$0xf]
                %903 = vst [vmem:[%s881 + $0x48] sm:$0xf] %v902
                %v904 = vld [vmem:[%s880 + $0x2c] sm:$0xf]
                %905 = vst [vmem:[%s881 + $0x4c] sm:$0xf] %v904
                %v906 = vld [vmem:[%s880 + $0x30] sm:$0xf]
                %907 = vst [vmem:[%s881 + $0x50] sm:$0xf] %v906
                %v908 = vld [vmem:[%s880 + $0x34] sm:$0xf]
                %909 = vst [vmem:[%s881 + $0x54] sm:$0xf] %v908
                %v910 = vld [vmem:[%s880 + $0x38] sm:$0xf]
                %911 = vst [vmem:[%s881 + $0x58] sm:$0xf] %v910
                %v912 = vld [vmem:[%s880 + $0x3c] sm:$0xf]
                %913 = vst [vmem:[%s881 + $0x5c] sm:$0xf] %v912
              $region53: #{sknet_bottleneck_forward.4} parent=47 // loop_footer
                %s879 = sadd.s32 1, %s875
              $region54: #{sknet_bottleneck_forward.4} parent=47 // loop_footer_branch
                %874 = sbr.rel target = $region50
              $region55: #{sknet_bottleneck_forward.4} parent=47 // loop_exit
                _
            $region48: #{sknet_bottleneck_forward.4} parent=39 // pred_fallthru
              _
          $region40: #{sknet_bottleneck_forward.4} parent=35 // pred_fallthru
            _
          %965 = vnop
        $region36: #{sknet_bottleneck_forward.4} parent=31 // pred_fallthru
          _
        // Predicated region
        $region74: #{sknet_bottleneck_forward.4} parent=31 // pred_check
          %p966 = pneg %p128
        $region75: #{sknet_bottleneck_forward.4} parent=31 // pred_check_branch
          %968 = sbr.rel (%p966) target = $region77
        $region76: #{sknet_bottleneck_forward.4} parent=31 // pred_region
          _
        $region77: #{sknet_bottleneck_forward.4} parent=31 // pred_fallthru
          _
      $region32: #{sknet_bottleneck_forward.4} parent=5 // pred_fallthru
        _
      %p969 = scmp.le.s32.totalorder 2, %s11
      // Predicated region
      $region78: #{sknet_bottleneck_forward.4} parent=5 // pred_check
        %p970 = pneg %p969
      $region79: #{sknet_bottleneck_forward.4} parent=5 // pred_check_branch
        %972 = sbr.rel (%p970) target = $region81
      $region80: #{sknet_bottleneck_forward.4} parent=5 // pred_region
        %s973 = ssub.s32 %s11, 2
        // Predicated region
        $region82: #{sknet_bottleneck_forward.4} parent=80 // pred_check
          %p974 = pneg %p108
        $region83: #{sknet_bottleneck_forward.4} parent=80 // pred_check_branch
          %976 = sbr.rel (%p974) target = $region85
        $region84: #{sknet_bottleneck_forward.4} parent=80 // pred_region
          %s977 = sand.u32 %s93, 1
          %s978 = sand.u32 %s93, 1
          %s979 = smul.addr %s978, 64
          %s980 = scalar_lea.vmem [#allocation3], %s979
        $region85: #{sknet_bottleneck_forward.4} parent=80 // pred_fallthru
          _
        // Predicated region
        $region86: #{sknet_bottleneck_forward.4} parent=80 // pred_check
          %p981 = pneg %p134
        $region87: #{sknet_bottleneck_forward.4} parent=80 // pred_check_branch
          %983 = sbr.rel (%p981) target = $region89
        $region88: #{sknet_bottleneck_forward.4} parent=80 // pred_region
          %p984 = scmp.lt.s32.totalorder %s17, 1
          %s985 = scalar_select %p984, %s17, 1
          %s986 = scalar_lea.vmem %s4, %s985
        $region89: #{sknet_bottleneck_forward.4} parent=80 // pred_fallthru
          _
      $region81: #{sknet_bottleneck_forward.4} parent=5 // pred_fallthru
        _
    $region6: #{sknet_bottleneck_forward.4} parent=1 // loop_footer
      %s15 = sadd.s32 1, %s11
    $region7: #{sknet_bottleneck_forward.4} parent=1 // loop_footer_branch
      %10 = sbr.rel target = $region3
    $region8: #{sknet_bottleneck_forward.4} parent=1 // loop_exit
      _

// kernel: sknet_bottleneck_forward.5
$region0: #{sknet_bottleneck_forward.5}
  #allocation0 [shape = 'u32[]', space=smem, size = 0x4, offset = 0x4, fixed_abs, tag = 'smem constant byte address 0x4 - core index']
  #allocation1 [shape = 'u32[144,128]{1,0:T(1,128)}', space=vmem, size = 0x12000, scoped, tag = 'internal scratch']
  %s0 = inlined_call_operand.vmem [shape: bf16[2,2,64,32], index: 0, kind: input, shape index: {}]
  %s1 = inlined_call_operand.vmem [shape: f32[2,2,32], index: 1, kind: input, shape index: {}]
  %s2 = inlined_call_operand.vmem [shape: bf16[32,64], index: 2, kind: input, shape index: {}]
  %s3 = inlined_call_operand.vmem [shape: f32[1,64], index: 3, kind: input, shape index: {}]
  %s4 = inlined_call_operand.hbm [shape: f32[2,64,64], index: 4, kind: output, shape index: {}]
  %s5 = sld [smem:[#allocation0]]
  $region90: #{sknet_bottleneck_forward.5} parent=0
    _
  %s7 = ssub.s32 1, %s5
  %s8 = scalar_select 0, %s7, %s5
  $region1: #{sknet_bottleneck_forward.5} parent=0
    #allocation2 [shape = 'u8[65536]{0}', space=vmem, size = 0x10000, scoped, tag = 'input window, operand 0']
    #allocation3 [shape = 'u8[65536]{0}', space=vmem, size = 0x10000, scoped, tag = 'output window, operand 0']
    #allocation4 [shape = 's32[2]{0}', space=sflag, size = 0x8, scoped, tag = 'scoped memory for sknet_bottleneck_forward.5']
    %9 = vsyncpa [#allocation4], 0
    %s10 = scalar_lea.sflag [#allocation4], 1
    %11 = vsyncpa %s10, 0
    loop: start=0, step=1, limit=4
    $region2: #{sknet_bottleneck_forward.5} parent=1 // loop_pre_header
      _
    $region3: #{sknet_bottleneck_forward.5} parent=1 // loop_header
      %s13 = sphi 0, %s17
      %p14 = scmp.ge.s32.totalorder %s13, 4
      %s20 = sphi 0, %s39
      %s21 = sphi 0, %s35
      %s22 = sphi 0, %s31
      %s23 = sphi 0, %s20
      %s24 = sphi 0, %s21
      %s25 = sphi 0, %s22
      %s26 = sphi 0, %s23
      %s27 = sphi 0, %s24
      %s28 = sphi 0, %s25
      %s44 = sphi 0, %s46
      %s47 = sphi 0, %s44
      %s48 = sphi 0, %s47
      %s64 = sphi 0, %s48
      %s70 = sphi 0, %s72
      %s73 = sphi 0, %s70
      %s74 = sphi 0, %s73
      %s90 = sphi 0, %s74
      %s96 = sphi 0, %s98
      %s99 = sphi 0, %s96
      %s100 = sphi 0, %s99
      %s116 = sphi 0, %s100
      %s122 = sphi 0, %s124
      %s125 = sphi 0, %s122
      %s126 = sphi 0, %s125
      %s142 = sphi 0, %s126
      %s152 = sphi 0, %s154
      %s155 = sphi 0, %s152
      %s156 = sphi 0, %s155
      %s172 = sphi 0, %s156
    $region4: #{sknet_bottleneck_forward.5} parent=1 // loop_header_branch
      %16 = sbr.rel (%p14) target = $region8
    $region5: #{sknet_bottleneck_forward.5} parent=1 // loop_body
      %s18 = ssub.s32 %s13, 1
      %s19 = ssub.s32 %s13, 2
      %s29 = sadd.s32 1, %s22
      %p30 = scmp.ge.s32.totalorder %s29, 1
      %s31 = scalar_select %p30, 0, %s29
      %s32 = sadd.s32 1, %s21
      %s33 = scalar_select %p30, %s32, %s21
      %p34 = scmp.ge.s32.totalorder %s33, 1
      %s35 = scalar_select %p34, 0, %s33
      %s36 = sadd.s32 1, %s20
      %s37 = scalar_select %p34, %s36, %s20
      %p38 = scmp.ge.s32.totalorder %s37, 2
      %s39 = scalar_select %p38, 0, %s37
      %s40 = ssub.s32 %s20, %s39
      %s41 = ssub.s32 %s21, %s35
      %s42 = sor.u32 %s40, %s41
      %p43 = scmp.eq.s32.totalorder %s42, 0
      %s45 = sadd.s32 %s44, 1
      %s46 = scalar_select %p43, %s44, %s45
      %p49 = pneg %p43
      %p50 = scmp.eq.s32.totalorder %s13, 1
      %p51 = por %p49, %p50
      %p52 = scmp.ne.s32.totalorder %s44, %s47
      %p53 = scmp.eq.s32.totalorder %s13, 0
      %p54 = por %p52, %p53
      %p55 = scmp.ne.s32.totalorder %s44, %s47
      %p56 = scmp.eq.s32.totalorder %s18, 1
      %p57 = por %p55, %p56
      %p58 = scmp.ne.s32.totalorder %s47, %s48
      %p59 = scmp.eq.s32.totalorder %s18, 0
      %p60 = por %p58, %p59
      %p61 = scmp.ne.s32.totalorder %s47, %s48
      %p62 = scmp.eq.s32.totalorder %s19, 1
      %p63 = por %p61, %p62
      %p65 = scmp.ne.s32.totalorder %s48, %s64
      %p66 = scmp.eq.s32.totalorder %s19, 0
      %p67 = por %p65, %p66
      %s68 = ssub.s32 %s20, %s39
      %p69 = scmp.eq.s32.totalorder %s68, 0
      %s71 = sadd.s32 %s70, 1
      %s72 = scalar_select %p69, %s70, %s71
      %p75 = pneg %p69
      %p76 = scmp.eq.s32.totalorder %s13, 1
      %p77 = por %p75, %p76
      %p78 = scmp.ne.s32.totalorder %s70, %s73
      %p79 = scmp.eq.s32.totalorder %s13, 0
      %p80 = por %p78, %p79
      %p81 = scmp.ne.s32.totalorder %s70, %s73
      %p82 = scmp.eq.s32.totalorder %s18, 1
      %p83 = por %p81, %p82
      %p84 = scmp.ne.s32.totalorder %s73, %s74
      %p85 = scmp.eq.s32.totalorder %s18, 0
      %p86 = por %p84, %p85
      %p87 = scmp.ne.s32.totalorder %s73, %s74
      %p88 = scmp.eq.s32.totalorder %s19, 1
      %p89 = por %p87, %p88
      %p91 = scmp.ne.s32.totalorder %s74, %s90
      %p92 = scmp.eq.s32.totalorder %s19, 0
      %p93 = por %p91, %p92
      %s94 = ssub.s32 %s22, %s31
      %p95 = scmp.eq.s32.totalorder %s94, 0
      %s97 = sadd.s32 %s96, 1
      %s98 = scalar_select %p95, %s96, %s97
      %p101 = pneg %p95
      %p102 = scmp.eq.s32.totalorder %s13, 1
      %p103 = por %p101, %p102
      %p104 = scmp.ne.s32.totalorder %s96, %s99
      %p105 = scmp.eq.s32.totalorder %s13, 0
      %p106 = por %p104, %p105
      %p107 = scmp.ne.s32.totalorder %s96, %s99
      %p108 = scmp.eq.s32.totalorder %s18, 1
      %p109 = por %p107, %p108
      %p110 = scmp.ne.s32.totalorder %s99, %s100
      %p111 = scmp.eq.s32.totalorder %s18, 0
      %p112 = por %p110, %p111
      %p113 = scmp.ne.s32.totalorder %s99, %s100
      %p114 = scmp.eq.s32.totalorder %s19, 1
      %p115 = por %p113, %p114
      %p117 = scmp.ne.s32.totalorder %s100, %s116
      %p118 = scmp.eq.s32.totalorder %s19, 0
      %p119 = por %p117, %p118
      %s120 = ssub.s32 %s22, %s31
      %p121 = scmp.eq.s32.totalorder %s120, 0
      %s123 = sadd.s32 %s122, 1
      %s124 = scalar_select %p121, %s122, %s123
      %p127 = pneg %p121
      %p128 = scmp.eq.s32.totalorder %s13, 1
      %p129 = por %p127, %p128
      %p130 = scmp.ne.s32.totalorder %s122, %s125
      %p131 = scmp.eq.s32.totalorder %s13, 0
      %p132 = por %p130, %p131
      %p133 = scmp.ne.s32.totalorder %s122, %s125
      %p134 = scmp.eq.s32.totalorder %s18, 1
      %p135 = por %p133, %p134
      %p136 = scmp.ne.s32.totalorder %s125, %s126
      %p137 = scmp.eq.s32.totalorder %s18, 0
      %p138 = por %p136, %p137
      %p139 = scmp.ne.s32.totalorder %s125, %s126
      %p140 = scmp.eq.s32.totalorder %s19, 1
      %p141 = por %p139, %p140
      %p143 = scmp.ne.s32.totalorder %s126, %s142
      %p144 = scmp.eq.s32.totalorder %s19, 0
      %p145 = por %p143, %p144
      %s146 = ssub.s32 %s20, %s39
      %s147 = ssub.s32 %s21, %s35
      %s148 = sor.u32 %s146, %s147
      %s149 = ssub.s32 %s22, %s31
      %s150 = sor.u32 %s148, %s149
      %p151 = scmp.eq.s32.totalorder %s150, 0
      %s153 = sadd.s32 %s152, 1
      %s154 = scalar_select %p151, %s152, %s153
      %p157 = pneg %p151
      %p158 = scmp.eq.s32.totalorder %s13, 1
      %p159 = por %p157, %p158
      %p160 = scmp.ne.s32.totalorder %s152, %s155
      %p161 = scmp.eq.s32.totalorder %s13, 0
      %p162 = por %p160, %p161
      %p163 = scmp.ne.s32.totalorder %s152, %s155
      %p164 = scmp.eq.s32.totalorder %s18, 1
      %p165 = por %p163, %p164
      %p166 = scmp.ne.s32.totalorder %s155, %s156
      %p167 = scmp.eq.s32.totalorder %s18, 0
      %p168 = por %p166, %p167
      %p169 = scmp.ne.s32.totalorder %s155, %s156
      %p170 = scmp.eq.s32.totalorder %s19, 1
      %p171 = por %p169, %p170
      %p173 = scmp.ne.s32.totalorder %s156, %s172
      %p174 = scmp.eq.s32.totalorder %s19, 0
      %p175 = por %p173, %p174
      %p176 = scmp.le.s32.totalorder 1, %s13
      %p177 = scmp.lt.s32.totalorder %s13, 3
      %p178 = pnand %p176, %p177
      %p179 = pneg %p178
      // Predicated region
      $region9: #{sknet_bottleneck_forward.5} parent=5 // pred_check
        _
      $region10: #{sknet_bottleneck_forward.5} parent=5 // pred_check_branch
        %181 = sbr.rel (%p178) target = $region12
      $region11: #{sknet_bottleneck_forward.5} parent=5 // pred_region
        %s182 = ssub.s32 %s13, 1
        // Predicated region
        $region13: #{sknet_bottleneck_forward.5} parent=11 // pred_check
          %p183 = pneg %p112
        $region14: #{sknet_bottleneck_forward.5} parent=11 // pred_check_branch
          %185 = sbr.rel (%p183) target = $region16
        $region15: #{sknet_bottleneck_forward.5} parent=11 // pred_region
          %p186 = scmp.lt.s32.totalorder %s25, 0
          %s187 = scalar_select %p186, %s25, 0
          %s188 = smul.addr %s187, 4
          %s189 = scalar_lea.vmem %s2, %s188
        $region16: #{sknet_bottleneck_forward.5} parent=11 // pred_fallthru
          _
        // Predicated region
        $region17: #{sknet_bottleneck_forward.5} parent=11 // pred_check
          %p190 = pneg %p138
        $region18: #{sknet_bottleneck_forward.5} parent=11 // pred_check_branch
          %192 = sbr.rel (%p190) target = $region20
        $region19: #{sknet_bottleneck_forward.5} parent=11 // pred_region
          %p193 = scmp.lt.s32.totalorder %s25, 0
          %s194 = scalar_select %p193, %s25, 0
          %s195 = scalar_lea.vmem %s3, %s194
        $region20: #{sknet_bottleneck_forward.5} parent=11 // pred_fallthru
          _
      $region12: #{sknet_bottleneck_forward.5} parent=5 // pred_fallthru
        _
      %p196 = scmp.lt.s32.totalorder %s13, 2
      // Predicated region
      $region21: #{sknet_bottleneck_forward.5} parent=5 // pred_check
        %p197 = pneg %p196
      $region22: #{sknet_bottleneck_forward.5} parent=5 // pred_check_branch
        %199 = sbr.rel (%p197) target = $region24
      $region23: #{sknet_bottleneck_forward.5} parent=5 // pred_region
        // Predicated region
        $region25: #{sknet_bottleneck_forward.5} parent=23 // pred_check
          %p200 = pneg %p54
        $region26: #{sknet_bottleneck_forward.5} parent=23 // pred_check_branch
          %202 = sbr.rel (%p200) target = $region28
        $region27: #{sknet_bottleneck_forward.5} parent=23 // pred_region
          %s203 = sand.u32 %s44, 1
          %s204 = sand.u32 %s44, 1
          %s205 = smul.addr %s204, 64
          %s206 = scalar_lea.vmem [#allocation2], %s205
          %s207 = smul.u32 8, %s21
          %s208 = smul.addr %s20, 8
          %s209 = sadd.s32 %s207, %s208
          %s210 = smul.addr %s209, 4
          %s211 = scalar_lea.vmem %s0, %s210
          // Predicated region
          $region29: #{sknet_bottleneck_forward.5} parent=27 // pred_check
            _
          $region30: #{sknet_bottleneck_forward.5} parent=27 // pred_check_branch
            %213 = sbr.rel (0) target = $region32
          $region31: #{sknet_bottleneck_forward.5} parent=27 // pred_region
            // Predicated region
            $region33: #{sknet_bottleneck_forward.5} parent=31 // pred_check
              _
            $region34: #{sknet_bottleneck_forward.5} parent=31 // pred_check_branch
              %215 = sbr.rel target = $region36
            $region35: #{sknet_bottleneck_forward.5} parent=31 // pred_region
              // Predicated region
              $region48: #{sknet_bottleneck_forward.5} parent=35 // pred_check
                _
              $region49: #{sknet_bottleneck_forward.5} parent=35 // pred_check_branch
                %260 = sbr.rel (0) target = $region51
              $region50: #{sknet_bottleneck_forward.5} parent=35 // pred_region
                loop: start=0, step=1, limit=1
                $region52: #{sknet_bottleneck_forward.5} parent=50 // loop_pre_header
                  _
                $region53: #{sknet_bottleneck_forward.5} parent=50 // loop_header
                  %s262 = sphi 0, %s266
                  %p263 = scmp.ge.s32.totalorder %s262, 1
                  %s267 = sphi %s211, %s211
                  %s268 = sphi %s206, %s206
                $region54: #{sknet_bottleneck_forward.5} parent=50 // loop_header_branch
                  %265 = sbr.rel (%p263) target = $region58
                $region55: #{sknet_bottleneck_forward.5} parent=50 // loop_body
                  _
                $region56: #{sknet_bottleneck_forward.5} parent=50 // loop_footer
                  %s266 = sadd.s32 1, %s262
                $region57: #{sknet_bottleneck_forward.5} parent=50 // loop_footer_branch
                  %261 = sbr.rel target = $region53
                $region58: #{sknet_bottleneck_forward.5} parent=50 // loop_exit
                  _
                loop: start=0, step=1, limit=1
                $region59: #{sknet_bottleneck_forward.5} parent=50 // loop_pre_header
                  _
                $region60: #{sknet_bottleneck_forward.5} parent=50 // loop_header
                  %s271 = sphi 0, %s275
                  %p272 = scmp.ge.s32.totalorder %s271, 1
                  %s276 = sphi %s211, %s211
                  %s277 = sphi %s206, %s206
                $region61: #{sknet_bottleneck_forward.5} parent=50 // loop_header_branch
                  %274 = sbr.rel (%p272) target = $region65
                $region62: #{sknet_bottleneck_forward.5} parent=50 // loop_body
                  %v278 = vld [vmem:[%s276] sm:$0xf]
                  %279 = vst [vmem:[%s277] sm:$0xf] %v278
                  %v280 = vld [vmem:[%s276 + $0x4] sm:$0xf]
                  %281 = vst [vmem:[%s277 + $0x4] sm:$0xf] %v280
                  %v282 = vld [vmem:[%s276 + $0x8] sm:$0xf]
                  %283 = vst [vmem:[%s277 + $0x8] sm:$0xf] %v282
                  %v284 = vld [vmem:[%s276 + $0xc] sm:$0xf]
                  %285 = vst [vmem:[%s277 + $0xc] sm:$0xf] %v284
                  %v286 = vld [vmem:[%s276 + $0x10] sm:$0xf]
                  %287 = vst [vmem:[%s277 + $0x10] sm:$0xf] %v286
                  %v288 = vld [vmem:[%s276 + $0x14] sm:$0xf]
                  %289 = vst [vmem:[%s277 + $0x14] sm:$0xf] %v288
                  %v290 = vld [vmem:[%s276 + $0x18] sm:$0xf]
                  %291 = vst [vmem:[%s277 + $0x18] sm:$0xf] %v290
                  %v292 = vld [vmem:[%s276 + $0x1c] sm:$0xf]
                  %293 = vst [vmem:[%s277 + $0x1c] sm:$0xf] %v292
                  %v294 = vld [vmem:[%s276 + $0x40] sm:$0xf]
                  %295 = vst [vmem:[%s277 + $0x20] sm:$0xf] %v294
                  %v296 = vld [vmem:[%s276 + $0x44] sm:$0xf]
                  %297 = vst [vmem:[%s277 + $0x24] sm:$0xf] %v296
                  %v298 = vld [vmem:[%s276 + $0x48] sm:$0xf]
                  %299 = vst [vmem:[%s277 + $0x28] sm:$0xf] %v298
                  %v300 = vld [vmem:[%s276 + $0x4c] sm:$0xf]
                  %301 = vst [vmem:[%s277 + $0x2c] sm:$0xf] %v300
                  %v302 = vld [vmem:[%s276 + $0x50] sm:$0xf]
                  %303 = vst [vmem:[%s277 + $0x30] sm:$0xf] %v302
                  %v304 = vld [vmem:[%s276 + $0x54] sm:$0xf]
                  %305 = vst [vmem:[%s277 + $0x34] sm:$0xf] %v304
                  %v306 = vld [vmem:[%s276 + $0x58] sm:$0xf]
                  %307 = vst [vmem:[%s277 + $0x38] sm:$0xf] %v306
                  %v308 = vld [vmem:[%s276 + $0x5c] sm:$0xf]
                  %309 = vst [vmem:[%s277 + $0x3c] sm:$0xf] %v308
                $region63: #{sknet_bottleneck_forward.5} parent=50 // loop_footer
                  %s275 = sadd.s32 1, %s271
                $region64: #{sknet_bottleneck_forward.5} parent=50 // loop_footer_branch
                  %270 = sbr.rel target = $region60
                $region65: #{sknet_bottleneck_forward.5} parent=50 // loop_exit
                  _
              $region51: #{sknet_bottleneck_forward.5} parent=35 // pred_fallthru
                _
            $region36: #{sknet_bottleneck_forward.5} parent=31 // pred_fallthru
              _
            // Predicated region
            $region37: #{sknet_bottleneck_forward.5} parent=31 // pred_check
              _
            $region38: #{sknet_bottleneck_forward.5} parent=31 // pred_check_branch
              %217 = sbr.rel (0) target = $region40
            $region39: #{sknet_bottleneck_forward.5} parent=31 // pred_region
              loop: start=0, step=1, limit=1
              $region41: #{sknet_bottleneck_forward.5} parent=39 // loop_pre_header
                _
              $region42: #{sknet_bottleneck_forward.5} parent=39 // loop_header
                %s220 = sphi 0, %s224
                %p221 = scmp.ge.s32.totalorder %s220, 1
                %s225 = sphi %s211, %s211
                %s226 = sphi %s206, %s206
              $region43: #{sknet_bottleneck_forward.5} parent=39 // loop_header_branch
                %223 = sbr.rel (%p221) target = $region47
              $region44: #{sknet_bottleneck_forward.5} parent=39 // loop_body
                %v227 = vld [vmem:[%s225] sm:$0xf]
                %228 = vst [vmem:[%s226] sm:$0xf] %v227
                %v229 = vld [vmem:[%s225 + $0x4] sm:$0xf]
                %230 = vst [vmem:[%s226 + $0x4] sm:$0xf] %v229
                %v231 = vld [vmem:[%s225 + $0x8] sm:$0xf]
                %232 = vst [vmem:[%s226 + $0x8] sm:$0xf] %v231
                %v233 = vld [vmem:[%s225 + $0xc] sm:$0xf]
                %234 = vst [vmem:[%s226 + $0xc] sm:$0xf] %v233
                %v235 = vld [vmem:[%s225 + $0x10] sm:$0xf]
                %236 = vst [vmem:[%s226 + $0x10] sm:$0xf] %v235
                %v237 = vld [vmem:[%s225 + $0x14] sm:$0xf]
                %238 = vst [vmem:[%s226 + $0x14] sm:$0xf] %v237
                %v239 = vld [vmem:[%s225 + $0x18] sm:$0xf]
                %240 = vst [vmem:[%s226 + $0x18] sm:$0xf] %v239
                %v241 = vld [vmem:[%s225 + $0x1c] sm:$0xf]
                %242 = vst [vmem:[%s226 + $0x1c] sm:$0xf] %v241
                %v243 = vld [vmem:[%s225 + $0x40] sm:$0xf]
                %244 = vst [vmem:[%s226 + $0x20] sm:$0xf] %v243
                %v245 = vld [vmem:[%s225 + $0x44] sm:$0xf]
                %246 = vst [vmem:[%s226 + $0x24] sm:$0xf] %v245
                %v247 = vld [vmem:[%s225 + $0x48] sm:$0xf]
                %248 = vst [vmem:[%s226 + $0x28] sm:$0xf] %v247
                %v249 = vld [vmem:[%s225 + $0x4c] sm:$0xf]
                %250 = vst [vmem:[%s226 + $0x2c] sm:$0xf] %v249
                %v251 = vld [vmem:[%s225 + $0x50] sm:$0xf]
                %252 = vst [vmem:[%s226 + $0x30] sm:$0xf] %v251
                %v253 = vld [vmem:[%s225 + $0x54] sm:$0xf]
                %254 = vst [vmem:[%s226 + $0x34] sm:$0xf] %v253
                %v255 = vld [vmem:[%s225 + $0x58] sm:$0xf]
                %256 = vst [vmem:[%s226 + $0x38] sm:$0xf] %v255
                %v257 = vld [vmem:[%s225 + $0x5c] sm:$0xf]
                %258 = vst [vmem:[%s226 + $0x3c] sm:$0xf] %v257
              $region45: #{sknet_bottleneck_forward.5} parent=39 // loop_footer
                %s224 = sadd.s32 1, %s220
              $region46: #{sknet_bottleneck_forward.5} parent=39 // loop_footer_branch
                %219 = sbr.rel target = $region42
              $region47: #{sknet_bottleneck_forward.5} parent=39 // loop_exit
                _
            $region40: #{sknet_bottleneck_forward.5} parent=31 // pred_fallthru
              _
          $region32: #{sknet_bottleneck_forward.5} parent=27 // pred_fallthru
            _
          %310 = vnop
        $region28: #{sknet_bottleneck_forward.5} parent=23 // pred_fallthru
          _
        // Predicated region
        $region66: #{sknet_bottleneck_forward.5} parent=23 // pred_check
          %p311 = pneg %p80
        $region67: #{sknet_bottleneck_forward.5} parent=23 // pred_check_branch
          %313 = sbr.rel (%p311) target = $region69
        $region68: #{sknet_bottleneck_forward.5} parent=23 // pred_region
          %p314 = scmp.lt.s32.totalorder %s20, 1
          %s315 = scalar_select %p314, %s20, 1
          %s316 = smul.addr %s315, 2
          %s317 = scalar_lea.vmem %s1, %s316
        $region69: #{sknet_bottleneck_forward.5} parent=23 // pred_fallthru
          _
      $region24: #{sknet_bottleneck_forward.5} parent=5 // pred_fallthru
        _
      %p318 = scmp.le.s32.totalorder 1, %s13
      %p319 = scmp.lt.s32.totalorder %s13, 3
      %p320 = pnand %p318, %p319
      %p321 = pneg %p320
      // Predicated region
      $region70: #{sknet_bottleneck_forward.5} parent=5 // pred_check
        _
      $region71: #{sknet_bottleneck_forward.5} parent=5 // pred_check_branch
        %323 = sbr.rel (%p320) target = $region73
      $region72: #{sknet_bottleneck_forward.5} parent=5 // pred_region
        %s324 = ssub.s32 %s13, 1
        %s325 = sand.u32 %s47, 1
        %s326 = sand.u32 %s47, 1
        %s327 = smul.addr %s326, 64
        %s328 = scalar_lea.vmem [#allocation2], %s327
        // Predicated region
        $region74: #{sknet_bottleneck_forward.5} parent=72 // pred_check
          %p329 = pneg %p60
        $region75: #{sknet_bottleneck_forward.5} parent=72 // pred_check_branch
          %331 = sbr.rel (%p329) target = $region77
        $region76: #{sknet_bottleneck_forward.5} parent=72 // pred_region
          _
        $region77: #{sknet_bottleneck_forward.5} parent=72 // pred_fallthru
          _
        %s332 = sand.u32 %s47, 1
        %s333 = sand.u32 %s47, 1
        %s334 = smul.addr %s333, 64
        %s335 = scalar_lea.vmem [#allocation2], %s334
        %p336 = pneg %p60
        %p337 = pneg %p57
        %p338 = scmp.lt.s32.totalorder %s23, 1
        %s339 = scalar_select %p338, %s23, 1
        %s340 = smul.addr %s339, 2
        %s341 = scalar_lea.vmem %s1, %s340
        %p342 = pneg %p86
        %p343 = pneg %p83
        %p344 = scmp.lt.s32.totalorder %s25, 0
        %s345 = scalar_select %p344, %s25, 0
        %s346 = smul.addr %s345, 4
        %s347 = scalar_lea.vmem %s2, %s346
        %p348 = pneg %p112
        %p349 = pneg %p109
        %p350 = scmp.lt.s32.totalorder %s25, 0
        %s351 = scalar_select %p350, %s25, 0
        %s352 = scalar_lea.vmem %s3, %s351
        %p353 = pneg %p138
        %p354 = pneg %p135
        %p355 = pneg %p168
        %p356 = pneg %p165
        %s357 = sand.u32 %s155, 1
        %s358 = scalar_lea.sflag [#allocation4], %s357
        %s359 = sand.u32 %s155, 1
        %s360 = smul.addr %s359, 64
        %s361 = scalar_lea.vmem [#allocation3], %s360
        %s362 = smul.u32 8, %s24
        %p363 = scmp.lt.s32.totalorder %s23, 1
        %s364 = scalar_select %p363, %s23, 1
        %s365 = smul.addr %s364, 2
        %s366 = scalar_lea.vmem %s1, %s365
        %p367 = scmp.lt.s32.totalorder %s25, 0
        %s368 = scalar_select %p367, %s25, 0
        %s369 = smul.addr %s368, 4
        %s370 = scalar_lea.vmem %s2, %s369
        %p371 = scmp.lt.s32.totalorder %s25, 0
        %s372 = scalar_select %p371, %s25, 0
        %s373 = scalar_lea.vmem %s3, %s372
        %s374 = smul.u32 8, %s24
        %v376 = vld [vmem:[%s366] sm:$0x3]
        %v377 = vld [vmem:[%s328] sm:$0xf]
        %v378 = vld [vmem:[%s328 + $0x4] sm:$0xf]
        %v379 = vld [vmem:[%s328 + $0x8] sm:$0xf]
        %v380 = vld [vmem:[%s328 + $0xc] sm:$0xf]
        %v381 = vld [vmem:[%s328 + $0x10] sm:$0xf]
        %v382 = vld [vmem:[%s328 + $0x14] sm:$0xf]
        %v383 = vld [vmem:[%s328 + $0x18] sm:$0xf]
        %v384 = vld [vmem:[%s328 + $0x1c] sm:$0xf]
        %v385 = vunpack.c.l.bf16 %v377
        %v386 = vunpack.c.l.bf16 %v378
        %v387 = vunpack.c.l.bf16 %v379
        %v388 = vunpack.c.l.bf16 %v380
        %v389 = vunpack.c.l.bf16 %v381
        %v390 = vunpack.c.l.bf16 %v382
        %v391 = vunpack.c.l.bf16 %v383
        %v392 = vunpack.c.l.bf16 %v384
        %v393 = vlaneseq
        %v394 = vshrl.u32 %v393, 7
        %v395 = vsub.s32 0, %v394
        %v396 = vrot.slane %v376, %v395
        %v397 = vmul.f32 %v396, %v385
        %v398 = vmul.f32 %v396, %v386
        %v399 = vmul.f32 %v396, %v387
        %v400 = vmul.f32 %v396, %v388
        %v401 = vmul.f32 %v396, %v389
        %v402 = vmul.f32 %v396, %v390
        %v403 = vmul.f32 %v396, %v391
        %v404 = vmul.f32 %v396, %v392
        %s405 = scalar_lea.vmem %s328, 32 [#allocation2]
        %v406 = vld [vmem:[%s405] sm:$0xf]
        %v407 = vld [vmem:[%s405 + $0x4] sm:$0xf]
        %v408 = vld [vmem:[%s405 + $0x8] sm:$0xf]
        %v409 = vld [vmem:[%s405 + $0xc] sm:$0xf]
        %v410 = vld [vmem:[%s405 + $0x10] sm:$0xf]
        %v411 = vld [vmem:[%s405 + $0x14] sm:$0xf]
        %v412 = vld [vmem:[%s405 + $0x18] sm:$0xf]
        %v413 = vld [vmem:[%s405 + $0x1c] sm:$0xf]
        %v414 = vunpack.c.l.bf16 %v406
        %v415 = vunpack.c.l.bf16 %v407
        %v416 = vunpack.c.l.bf16 %v408
        %v417 = vunpack.c.l.bf16 %v409
        %v418 = vunpack.c.l.bf16 %v410
        %v419 = vunpack.c.l.bf16 %v411
        %v420 = vunpack.c.l.bf16 %v412
        %v421 = vunpack.c.l.bf16 %v413
        %v422 = vlaneseq
        %v423 = vshrl.u32 %v422, 7
        %v424 = vsub.s32 1, %v423
        %v425 = vrot.slane %v376, %v424
        %v426 = vmul.f32 %v425, %v414
        %v427 = vmul.f32 %v425, %v415
        %v428 = vmul.f32 %v425, %v416
        %v429 = vmul.f32 %v425, %v417
        %v430 = vmul.f32 %v425, %v418
        %v431 = vmul.f32 %v425, %v419
        %v432 = vmul.f32 %v425, %v420
        %v433 = vmul.f32 %v425, %v421
        %v434 = vadd.f32 %v397, %v426
        %v435 = vadd.f32 %v398, %v427
        %v436 = vadd.f32 %v399, %v428
        %v437 = vadd.f32 %v400, %v429
        %v438 = vadd.f32 %v401, %v430
        %v439 = vadd.f32 %v402, %v431
        %v440 = vadd.f32 %v403, %v432
        %v441 = vadd.f32 %v404, %v433
        %v442 = vpack.c.bf16 %v435, %v434
        %v443 = vpack.c.bf16 %v437, %v436
        %v444 = vpack.c.bf16 %v439, %v438
        %v445 = vpack.c.bf16 %v441, %v440
        %v446 = vld [vmem:[%s370] sm:$0xf]
        %v447 = vld [vmem:[%s370 + $0x4] sm:$0xf]
        %v448 = vld [vmem:[%s370 + $0x8] sm:$0xf]
        %v449 = vld [vmem:[%s370 + $0xc] sm:$0xf]
        %v450 = vld [vmem:[%s373] sm:$0x1]
        %v452 = vlaneseq
        %v453 = vshrl.u32 %v452, 7
        %v454 = vsub.s32 0, %v453
        %v455 = vrot.slane %v450, %v454
        %v461 = vunpack.c.l.b16 %v446
        %v462 = vunpack.c.l.b16 %v447
        %v463 = vunpack.c.l.b16 %v448
        %v464 = vunpack.c.l.b16 %v449
        %v465 = vpack.c.b16 %v462, %v461
        %v466 = vpack.c.b16 %v464, %v463
        %vm469 = vcmask 261120
        %v471 = vsel %vm469, %v442, 0
        %v474 = vsel %vm469, %v443, 0
        %v477 = vsel %vm469, %v444, 0
        %v480 = vsel %vm469, %v445, 0
        %482 = vmatprep.subr.bf16.mxu0 0
        %483 = vmatpush1.bf16.msra.mxu0 %v465
        %484 = vmatprep.subr.bf16.mxu0 0
        %485 = vmatpush1.bf16.msra.mxu0 %v466
        %486 = vmatprep.subr.bf16.mxu0 0
        %487 = vmatpush1.bf16.msra.mxu0 0
        %488 = vmatprep.subr.bf16.mxu0 0
        %489 = vmatpush1.bf16.msra.mxu0 0
        %490 = vmatprep.subr.bf16.mxu0 0
        %491 = vmatpush1.bf16.msra.mxu0 0
        %492 = vmatprep.subr.bf16.mxu0 0
        %493 = vmatpush1.bf16.msra.mxu0 0
        %494 = vmatprep.subr.bf16.mxu0 0
        %495 = vmatpush1.bf16.msra.mxu0 0
        %496 = vmatprep.subr.bf16.mxu0 0
        %497 = vmatpush1.bf16.msra.mxu0 0
        %498 = vmatprep.subr.bf16.mxu0 0
        %499 = vmatpush1.bf16.msra.mxu0 0
        %500 = vmatprep.subr.bf16.mxu0 0
        %501 = vmatpush1.bf16.msra.mxu0 0
        %502 = vmatprep.subr.bf16.mxu0 0
        %503 = vmatpush1.bf16.msra.mxu0 0
        %504 = vmatprep.subr.bf16.mxu0 0
        %505 = vmatpush1.bf16.msra.mxu0 0
        %506 = vmatprep.subr.bf16.mxu0 0
        %507 = vmatpush1.bf16.msra.mxu0 0
        %508 = vmatprep.subr.bf16.mxu0 0
        %509 = vmatpush1.bf16.msra.mxu0 0
        %510 = vmatprep.subr.bf16.mxu0 0
        %511 = vmatpush1.bf16.msra.mxu0 0
        %512 = vmatprep.subr.bf16.mxu0 0
        %513 = vmatpush1.bf16.msra.mxu0 0
        %514 = vmatprep.mubr.bf16.mxu0 0
        %515 = vmatmul.mubr.bf16.gmra.mrb[0].mxu0 %v471
        %v516 = vpop.f32.mrb[0].mxu0
        %v517 = vadd.f32 %v455, %v516
        %v518 = vpop.f32.mrb[0].mxu0
        %v519 = vpop.f32.mrb[0].mxu0
        %v520 = vadd.f32 %v455, %v519
        %v521 = vpop.f32.mrb[0].mxu0
        %522 = vmatprep.mubr.bf16.mxu0 0
        %523 = vmatmul.mubr.bf16.gmra.mrb[0].mxu0 %v474
        %v524 = vpop.f32.mrb[0].mxu0
        %v525 = vadd.f32 %v455, %v524
        %v526 = vpop.f32.mrb[0].mxu0
        %v527 = vpop.f32.mrb[0].mxu0
        %v528 = vadd.f32 %v455, %v527
        %v529 = vpop.f32.mrb[0].mxu0
        %530 = vmatprep.mubr.bf16.mxu0 0
        %531 = vmatmul.mubr.bf16.gmra.mrb[0].mxu0 %v477
        %v532 = vpop.f32.mrb[0].mxu0
        %v533 = vadd.f32 %v455, %v532
        %v534 = vpop.f32.mrb[0].mxu0
        %v535 = vpop.f32.mrb[0].mxu0
        %v536 = vadd.f32 %v455, %v535
        %v537 = vpop.f32.mrb[0].mxu0
        %538 = vmatprep.mubr.bf16.mxu0 0
        %539 = vmatmul.mubr.bf16.gmra.mrb[0].mxu0 %v480
        %v540 = vpop.f32.mrb[0].mxu0
        %v541 = vadd.f32 %v455, %v540
        %v542 = vpop.f32.mrb[0].mxu0
        %v543 = vpop.f32.mrb[0].mxu0
        %v544 = vadd.f32 %v455, %v543
        %v545 = vpop.f32.mrb[0].mxu0
        %546 = vdwg.mxu0
        %vm547 = vcmask 523264
        %548 = vst.msk [vmem:[%s361] sm:$0xff] %vm547, %v517
        %549 = vst.msk [vmem:[%s361 + $0x8] sm:$0xff] %vm547, %v520
        %550 = vst.msk [vmem:[%s361 + $0x10] sm:$0xff] %vm547, %v525
        %551 = vst.msk [vmem:[%s361 + $0x18] sm:$0xff] %vm547, %v528
        %552 = vst.msk [vmem:[%s361 + $0x20] sm:$0xff] %vm547, %v533
        %553 = vst.msk [vmem:[%s361 + $0x28] sm:$0xff] %vm547, %v536
        %554 = vst.msk [vmem:[%s361 + $0x30] sm:$0xff] %vm547, %v541
        %555 = vst.msk [vmem:[%s361 + $0x38] sm:$0xff] %vm547, %v544
        %s556 = sand.u32 %s155, 1
        %s557 = scalar_lea.sflag [#allocation4], %s556
        %s558 = sand.u32 %s155, 1
        %s559 = smul.addr %s558, 64
        %s560 = scalar_lea.vmem [#allocation3], %s559
        // Predicated region
        $region78: #{sknet_bottleneck_forward.5} parent=72 // pred_check
          %p561 = pneg %p165
        $region79: #{sknet_bottleneck_forward.5} parent=72 // pred_check_branch
          %563 = sbr.rel (%p561) target = $region81
        $region80: #{sknet_bottleneck_forward.5} parent=72 // pred_region
          %s564 = smul.u32 8, %s24
          %s566 = ssub.s32 1024, 1024
          %567 = vsyncadd %s557, %s566
          %s568 = sadd.s32 %s25, %s564
          %s569 = smul.addr %s23, 8
          %s570 = sadd.s32 %s568, %s569
          %s571 = smul.addr %s570, 128
          %s572 = scalar_lea.hbm %s4, %s571
          %s573 = sshll.u32 %s560, 4
          %s574 = int_to_ptr.vmem [resolvable:$true] %s573
          %579 = dma.vmem_to_hbm [thread:$0]  %s574, 1024, %s572, %s557, 128, 128, 8
        $region81: #{sknet_bottleneck_forward.5} parent=72 // pred_fallthru
          _
      $region73: #{sknet_bottleneck_forward.5} parent=5 // pred_fallthru
        _
      %p580 = scmp.le.s32.totalorder 2, %s13
      // Predicated region
      $region82: #{sknet_bottleneck_forward.5} parent=5 // pred_check
        %p581 = pneg %p580
      $region83: #{sknet_bottleneck_forward.5} parent=5 // pred_check_branch
        %583 = sbr.rel (%p581) target = $region85
      $region84: #{sknet_bottleneck_forward.5} parent=5 // pred_region
        %s584 = ssub.s32 %s13, 2
        // Predicated region
        $region86: #{sknet_bottleneck_forward.5} parent=84 // pred_check
          %p585 = pneg %p171
        $region87: #{sknet_bottleneck_forward.5} parent=84 // pred_check_branch
          %587 = sbr.rel (%p585) target = $region89
        $region88: #{sknet_bottleneck_forward.5} parent=84 // pred_region
          %s588 = sand.u32 %s156, 1
          %s589 = scalar_lea.sflag [#allocation4], %s588
          %s590 = sand.u32 %s156, 1
          %s591 = smul.addr %s590, 64
          %s592 = scalar_lea.vmem [#allocation3], %s591
          %593 = dma.done %s589, 1024
        $region89: #{sknet_bottleneck_forward.5} parent=84 // pred_fallthru
          _
      $region85: #{sknet_bottleneck_forward.5} parent=5 // pred_fallthru
        _
    $region6: #{sknet_bottleneck_forward.5} parent=1 // loop_footer
      %s17 = sadd.s32 1, %s13
    $region7: #{sknet_bottleneck_forward.5} parent=1 // loop_footer_branch
      %12 = sbr.rel target = $region3
    $region8: #{sknet_bottleneck_forward.5} parent=1 // loop_exit
      _
    %594 = vsyncpa [#allocation4], 1
    %s595 = scalar_lea.sflag [#allocation4], 1
    %596 = vsyncpa %s595, 1

</llo_original>
